<compile_context>
chip_gen: v6e
topology: v6e:2x2x1
jax: 0.10.0
libtpu: 0.0.40
codegen_flags: <defaults>
</compile_context>

<pallas_src>
import jax
import jax.numpy as jnp
from jax import lax
from jax.experimental import pallas as pl
from jax.experimental.pallas import tpu as pltpu


def _residual_block_kernel(x_ref, w1_ref, w2_ref, pool_ref,
                           g1_ref, b1_ref, g2_ref, b2_ref,
                           out_ref, h1p_ref):
    """Fused residual block in lane-dense (rows, W*C) layout.

    x_ref   : (N, H+2, W*C) f32 input; rows 0 and H+1 of each image are zero.
    w1_ref  : (3, W*C, W*C) banded conv1 weights (one matrix per vertical tap).
    w2_ref  : (3, W*C, W*C) banded conv2 weights.
    pool_ref: (W*C, W*C) channel-mean pooling matrix (1/(N*H*W) folded in).
    g*/b*   : (1, W*C) BN gamma/beta tiled across the W axis.
    out_ref : (N*H, W*C) output slab.
    h1p_ref : (N, H+2, W*C) VMEM scratch for the vertically padded conv1 out.
    """
    N, Hp, WC = x_ref.shape
    H = Hp - 2
    NH = N * H
    eps = 1e-5

    pool = pool_ref[...]  # hoisted: reused by both BatchNorms

    def conv3x3(src_ref, w_ref):
        # Three full-lane slabs (vertical taps); horizontal taps + x-padding
        # are encoded in the banded weights -> 3 MXU dots with K = N = W*C.
        acc = jnp.dot(src_ref[:, 0:H, :].reshape(NH, WC), w_ref[0],
                      preferred_element_type=jnp.float32)
        acc = acc + jnp.dot(src_ref[:, 1:1 + H, :].reshape(NH, WC), w_ref[1],
                            preferred_element_type=jnp.float32)
        acc = acc + jnp.dot(src_ref[:, 2:2 + H, :].reshape(NH, WC), w_ref[2],
                            preferred_element_type=jnp.float32)
        return acc  # (NH, WC) f32

    def batchnorm(acc, g_ref, b_ref):
        # Training-mode batch statistics (biased variance, centered form).
        # `pool` sums a channel's W lane replicas and divides by N*H*W, so
        # mean/var come out already tiled across the lane dimension.
        mean = jnp.sum(jnp.dot(acc, pool,
                               preferred_element_type=jnp.float32),
                       axis=0, keepdims=True)
        diff = acc - mean
        var = jnp.sum(jnp.dot(diff * diff, pool,
                              preferred_element_type=jnp.float32),
                      axis=0, keepdims=True)
        scale = g_ref[...] * lax.rsqrt(var + eps)
        return diff * scale + b_ref[...]

    # ---- conv1 -> bn1 -> relu ----------------------------------------------
    h1 = jnp.maximum(batchnorm(conv3x3(x_ref, w1_ref), g1_ref, b1_ref), 0.0)

    # ---- vertical zero-pad h1 into scratch (halo rows only + interior) ------
    zero_row = jnp.zeros((N, 1, WC), dtype=jnp.float32)
    h1p_ref[:, 0:1, :] = zero_row
    h1p_ref[:, Hp - 1:Hp, :] = zero_row
    h1p_ref[:, 1:1 + H, :] = h1.reshape(N, H, WC)

    # ---- conv2 -> bn2 -> +residual -> relu ----------------------------------
    h2 = batchnorm(conv3x3(h1p_ref, w2_ref), g2_ref, b2_ref)
    residual = x_ref[:, 1:1 + H, :].reshape(NH, WC)
    out_ref[...] = jnp.maximum(h2 + residual, 0.0)


def _banded_conv_weights(w, width):
    """(Cout, Cin, 3, 3) conv weight -> (3, W*C, W*C) banded matrices.

    For vertical tap ky, the matrix maps a dense input row (length W*C,
    channels fastest) to a dense output row; the three horizontal taps and
    horizontal zero padding are encoded as shifted block diagonals.
    """
    w = w.astype(jnp.float32)
    mats = []
    for ky in range(3):
        m = 0.0
        for kx in range(3):
            tap = jnp.transpose(w[:, :, ky, kx])                 # (Cin, Cout)
            shift = jnp.eye(width, k=1 - kx, dtype=jnp.float32)  # (W, W)
            m = m + jnp.kron(shift, tap)
        mats.append(m)
    return jnp.stack(mats)                                       # (3, WC, WC)


def residual_block(x_nhwc, w1, g1, b1, w2, g2, b2):
    """x_nhwc: (N, H, W, C) f32; w1/w2: PyTorch-layout (Cout, Cin, 3, 3)."""
    N, H, W, C = x_nhwc.shape
    # stride=1, downsample=None  =>  in_channels == out_channels
    assert w1.shape == (C, C, 3, 3) and w2.shape == (C, C, 3, 3)
    WC = W * C
    NH = N * H

    # Lane-dense activations, zero-padded along H only (the x-padding is
    # folded into the banded weights).
    x_pad = jnp.pad(x_nhwc.astype(jnp.float32).reshape(N, H, WC),
                    ((0, 0), (1, 1), (0, 0)))

    w1_b = _banded_conv_weights(w1, W)
    w2_b = _banded_conv_weights(w2, W)

    # Channel-mean pooling matrix (BN normalization folded in).
    pool = jnp.kron(jnp.ones((W, W), jnp.float32),
                    jnp.eye(C, dtype=jnp.float32)) / float(N * H * W)

    tile = lambda v: jnp.tile(v.astype(jnp.float32), W).reshape(1, WC)
    g1_d, b1_d, g2_d, b2_d = tile(g1), tile(b1), tile(g2), tile(b2)

    full = lambda shape: pl.BlockSpec(shape, lambda i: (0,) * len(shape))
    out_dense = pl.pallas_call(
        _residual_block_kernel,
        out_shape=jax.ShapeDtypeStruct((NH, WC), jnp.float32),
        grid=(1,),
        in_specs=[
            full((N, H + 2, WC)),
            full((3, WC, WC)),
            full((3, WC, WC)),
            full((WC, WC)),
            full((1, WC)),
            full((1, WC)),
            full((1, WC)),
            full((1, WC)),
        ],
        out_specs=full((NH, WC)),
        scratch_shapes=[pltpu.VMEM((N, H + 2, WC), jnp.float32)],
        compiler_params=pltpu.CompilerParams(
            dimension_semantics=("arbitrary",)),
    )(x_pad, w1_b, w2_b, pool, g1_d, b1_d, g2_d, b2_d)

    return out_dense.reshape(N, H, W, C)


# --------------------------- pure-JAX reference ------------------------------
def _ref_residual_block(x_nhwc, w1, g1, b1, w2, g2, b2, eps=1e-5):
    def conv(x, w):  # w: (Cout, Cin, 3, 3) -> HWIO
        w_hwio = jnp.transpose(w, (2, 3, 1, 0))
        return lax.conv_general_dilated(
            x, w_hwio, window_strides=(1, 1), padding="SAME",
            dimension_numbers=("NHWC", "HWIO", "NHWC"))

    def bn(x, g, b):
        mean = jnp.mean(x, axis=(0, 1, 2), keepdims=True)
        var = jnp.mean((x - mean) ** 2, axis=(0, 1, 2), keepdims=True)
        return (x - mean) * lax.rsqrt(var + eps) * g + b

    out = jnp.maximum(bn(conv(x_nhwc, w1), g1, b1), 0.0)
    out = bn(conv(out, w2), g2, b2)
    return jnp.maximum(out + x_nhwc, 0.0)


if __name__ == "__main__":
    N, C, H, W = 2, 8, 16, 16  # in_channels == out_channels (downsample=None)
    key = jax.random.PRNGKey(0)
    k_x, k_w1, k_w2, k_g1, k_b1, k_g2, k_b2 = jax.random.split(key, 7)

    x_nchw = jax.random.normal(k_x, (N, C, H, W), dtype=jnp.float32)
    x_nhwc = jnp.transpose(x_nchw, (0, 2, 3, 1))

    # deterministic synthetic parameters (PyTorch shapes)
    w1 = jax.random.normal(k_w1, (C, C, 3, 3), dtype=jnp.float32) * 0.1
    w2 = jax.random.normal(k_w2, (C, C, 3, 3), dtype=jnp.float32) * 0.1
    g1 = 1.0 + 0.1 * jax.random.normal(k_g1, (C,), dtype=jnp.float32)
    b1 = 0.1 * jax.random.normal(k_b1, (C,), dtype=jnp.float32)
    g2 = 1.0 + 0.1 * jax.random.normal(k_g2, (C,), dtype=jnp.float32)
    b2 = 0.1 * jax.random.normal(k_b2, (C,), dtype=jnp.float32)

    out = residual_block(x_nhwc, w1, g1, b1, w2, g2, b2)
    out = jax.block_until_ready(out)

    ref = _ref_residual_block(x_nhwc, w1, g1, b1, w2, g2, b2)
    assert jnp.allclose(out, ref, rtol=1e-3, atol=1e-3), (
        float(jnp.max(jnp.abs(out - ref))))

    print("KERNEL_OK")
</pallas_src>

<mosaic_0001>
module attributes {stable_mosaic.version = 11 : i64} {
  func.func @_residual_block_kernel(%arg0: i32, %arg1: memref<2x18x128xf32, #tpu.memory_space<vmem>>, %arg2: memref<3x128x128xf32, #tpu.memory_space<vmem>>, %arg3: memref<3x128x128xf32, #tpu.memory_space<vmem>>, %arg4: memref<128x128xf32, #tpu.memory_space<vmem>>, %arg5: memref<1x128xf32, #tpu.memory_space<vmem>>, %arg6: memref<1x128xf32, #tpu.memory_space<vmem>>, %arg7: memref<1x128xf32, #tpu.memory_space<vmem>>, %arg8: memref<1x128xf32, #tpu.memory_space<vmem>>, %arg9: memref<32x128xf32, #tpu.memory_space<vmem>>, %arg10: memref<2x18x128xf32, #tpu.memory_space<vmem>>) attributes {dimension_semantics = [#tpu.dimension_semantics<arbitrary>], iteration_bounds = array<i64: 1>, scalar_prefetch = 0 : i64, scratch_operands = 1 : i64, tpu.core_type = #tpu.core_type<tc>, window_params = [{pipeline_mode = #tpu.pipeline_mode<synchronous>, transform_indices = @transform_0, window_bounds = array<i64: 2, 18, 128>}, {pipeline_mode = #tpu.pipeline_mode<synchronous>, transform_indices = @transform_1, window_bounds = array<i64: 3, 128, 128>}, {pipeline_mode = #tpu.pipeline_mode<synchronous>, transform_indices = @transform_2, window_bounds = array<i64: 3, 128, 128>}, {pipeline_mode = #tpu.pipeline_mode<synchronous>, transform_indices = @transform_3, window_bounds = array<i64: 128, 128>}, {pipeline_mode = #tpu.pipeline_mode<synchronous>, transform_indices = @transform_4, window_bounds = array<i64: 1, 128>}, {pipeline_mode = #tpu.pipeline_mode<synchronous>, transform_indices = @transform_5, window_bounds = array<i64: 1, 128>}, {pipeline_mode = #tpu.pipeline_mode<synchronous>, transform_indices = @transform_6, window_bounds = array<i64: 1, 128>}, {pipeline_mode = #tpu.pipeline_mode<synchronous>, transform_indices = @transform_7, window_bounds = array<i64: 1, 128>}, {pipeline_mode = #tpu.pipeline_mode<synchronous>, transform_indices = @transform_8, window_bounds = array<i64: 32, 128>}]} {
    %c0 = arith.constant 0 : index
    %c0_0 = arith.constant 0 : index
    %0 = vector.load %arg4[%c0, %c0_0] : memref<128x128xf32, #tpu.memory_space<vmem>>, vector<128x128xf32>
    %c0_1 = arith.constant 0 : index
    %c0_2 = arith.constant 0 : index
    %c0_3 = arith.constant 0 : index
    %1 = vector.load %arg1[%c0_1, %c0_2, %c0_3] : memref<2x18x128xf32, #tpu.memory_space<vmem>>, vector<2x16x128xf32>
    %2 = vector.shape_cast %1 : vector<2x16x128xf32> to vector<32x128xf32>
    %c0_4 = arith.constant 0 : index
    %c0_5 = arith.constant 0 : index
    %c0_6 = arith.constant 0 : index
    %3 = vector.load %arg2[%c0_4, %c0_5, %c0_6] : memref<3x128x128xf32, #tpu.memory_space<vmem>>, vector<1x128x128xf32>
    %4 = vector.shape_cast %3 : vector<1x128x128xf32> to vector<128x128xf32>
    %cst = arith.constant dense<0.000000e+00> : vector<32x128xf32>
    %5 = tpu.matmul %2, %4, %cst {dimension_numbers = #tpu.dot_dimension_numbers<[1], [0], [0], [1], [0, 0, 1, 1], [], []>} : vector<32x128xf32>, vector<128x128xf32>, vector<32x128xf32> -> vector<32x128xf32>
    %c0_7 = arith.constant 0 : index
    %c1 = arith.constant 1 : index
    %c0_8 = arith.constant 0 : index
    %6 = vector.load %arg1[%c0_7, %c1, %c0_8] : memref<2x18x128xf32, #tpu.memory_space<vmem>>, vector<2x16x128xf32>
    %7 = vector.shape_cast %6 : vector<2x16x128xf32> to vector<32x128xf32>
    %c1_9 = arith.constant 1 : index
    %c0_10 = arith.constant 0 : index
    %c0_11 = arith.constant 0 : index
    %8 = vector.load %arg2[%c1_9, %c0_10, %c0_11] : memref<3x128x128xf32, #tpu.memory_space<vmem>>, vector<1x128x128xf32>
    %9 = vector.shape_cast %8 : vector<1x128x128xf32> to vector<128x128xf32>
    %cst_12 = arith.constant dense<0.000000e+00> : vector<32x128xf32>
    %10 = tpu.matmul %7, %9, %cst_12 {dimension_numbers = #tpu.dot_dimension_numbers<[1], [0], [0], [1], [0, 0, 1, 1], [], []>} : vector<32x128xf32>, vector<128x128xf32>, vector<32x128xf32> -> vector<32x128xf32>
    %11 = arith.addf %5, %10 : vector<32x128xf32>
    %c0_13 = arith.constant 0 : index
    %c2 = arith.constant 2 : index
    %c0_14 = arith.constant 0 : index
    %12 = vector.load %arg1[%c0_13, %c2, %c0_14] : memref<2x18x128xf32, #tpu.memory_space<vmem>>, vector<2x16x128xf32>
    %13 = vector.shape_cast %12 : vector<2x16x128xf32> to vector<32x128xf32>
    %c2_15 = arith.constant 2 : index
    %c0_16 = arith.constant 0 : index
    %c0_17 = arith.constant 0 : index
    %14 = vector.load %arg2[%c2_15, %c0_16, %c0_17] : memref<3x128x128xf32, #tpu.memory_space<vmem>>, vector<1x128x128xf32>
    %15 = vector.shape_cast %14 : vector<1x128x128xf32> to vector<128x128xf32>
    %cst_18 = arith.constant dense<0.000000e+00> : vector<32x128xf32>
    %16 = tpu.matmul %13, %15, %cst_18 {dimension_numbers = #tpu.dot_dimension_numbers<[1], [0], [0], [1], [0, 0, 1, 1], [], []>} : vector<32x128xf32>, vector<128x128xf32>, vector<32x128xf32> -> vector<32x128xf32>
    %17 = arith.addf %11, %16 : vector<32x128xf32>
    %cst_19 = arith.constant dense<0.000000e+00> : vector<32x128xf32>
    %18 = tpu.matmul %17, %0, %cst_19 {dimension_numbers = #tpu.dot_dimension_numbers<[1], [0], [0], [1], [0, 0, 1, 1], [], []>} : vector<32x128xf32>, vector<128x128xf32>, vector<32x128xf32> -> vector<32x128xf32>
    %cst_20 = arith.constant dense<0.000000e+00> : vector<128xf32>
    %19 = vector.multi_reduction <add>, %18, %cst_20 [0] : vector<32x128xf32> to vector<128xf32>
    %20 = vector.shape_cast %19 : vector<128xf32> to vector<1x128xf32>
    %21 = vector.broadcast %20 : vector<1x128xf32> to vector<32x128xf32>
    %22 = arith.subf %17, %21 : vector<32x128xf32>
    %23 = arith.mulf %22, %22 : vector<32x128xf32>
    %cst_21 = arith.constant dense<0.000000e+00> : vector<32x128xf32>
    %24 = tpu.matmul %23, %0, %cst_21 {dimension_numbers = #tpu.dot_dimension_numbers<[1], [0], [0], [1], [0, 0, 1, 1], [], []>} : vector<32x128xf32>, vector<128x128xf32>, vector<32x128xf32> -> vector<32x128xf32>
    %cst_22 = arith.constant dense<0.000000e+00> : vector<128xf32>
    %25 = vector.multi_reduction <add>, %24, %cst_22 [0] : vector<32x128xf32> to vector<128xf32>
    %26 = vector.shape_cast %25 : vector<128xf32> to vector<1x128xf32>
    %c0_23 = arith.constant 0 : index
    %c0_24 = arith.constant 0 : index
    %27 = vector.load %arg5[%c0_23, %c0_24] : memref<1x128xf32, #tpu.memory_space<vmem>>, vector<1x128xf32>
    %cst_25 = arith.constant 9.99999974E-6 : f32
    %28 = vector.broadcast %cst_25 : f32 to vector<1x128xf32>
    %29 = arith.addf %26, %28 : vector<1x128xf32>
    %30 = math.rsqrt %29 : vector<1x128xf32>
    %31 = arith.mulf %27, %30 : vector<1x128xf32>
    %32 = vector.broadcast %31 : vector<1x128xf32> to vector<32x128xf32>
    %33 = arith.mulf %22, %32 : vector<32x128xf32>
    %c0_26 = arith.constant 0 : index
    %c0_27 = arith.constant 0 : index
    %34 = vector.load %arg6[%c0_26, %c0_27] : memref<1x128xf32, #tpu.memory_space<vmem>>, vector<1x128xf32>
    %35 = vector.broadcast %34 : vector<1x128xf32> to vector<32x128xf32>
    %36 = arith.addf %33, %35 : vector<32x128xf32>
    %cst_28 = arith.constant 0.000000e+00 : f32
    %37 = vector.broadcast %cst_28 : f32 to vector<32x128xf32>
    %38 = arith.maximumf %36, %37 : vector<32x128xf32>
    %cst_29 = arith.constant 0.000000e+00 : f32
    %39 = vector.broadcast %cst_29 : f32 to vector<2x1x128xf32>
    %c0_30 = arith.constant 0 : index
    %c0_31 = arith.constant 0 : index
    %c0_32 = arith.constant 0 : index
    %40 = vector.load %arg10[%c0_30, %c0_31, %c0_32] : memref<2x18x128xf32, #tpu.memory_space<vmem>>, vector<2x1x128xf32>
    tpu.vector_store %arg10[%c0_30, %c0_31, %c0_32], %39 {strides = array<i32>} : memref<2x18x128xf32, #tpu.memory_space<vmem>>, vector<2x1x128xf32>,
    %c0_33 = arith.constant 0 : index
    %c17 = arith.constant 17 : index
    %c0_34 = arith.constant 0 : index
    %41 = vector.load %arg10[%c0_33, %c17, %c0_34] : memref<2x18x128xf32, #tpu.memory_space<vmem>>, vector<2x1x128xf32>
    tpu.vector_store %arg10[%c0_33, %c17, %c0_34], %39 {strides = array<i32>} : memref<2x18x128xf32, #tpu.memory_space<vmem>>, vector<2x1x128xf32>,
    %42 = vector.shape_cast %38 : vector<32x128xf32> to vector<2x16x128xf32>
    %c0_35 = arith.constant 0 : index
    %c1_36 = arith.constant 1 : index
    %c0_37 = arith.constant 0 : index
    %43 = vector.load %arg10[%c0_35, %c1_36, %c0_37] : memref<2x18x128xf32, #tpu.memory_space<vmem>>, vector<2x16x128xf32>
    tpu.vector_store %arg10[%c0_35, %c1_36, %c0_37], %42 {strides = array<i32>} : memref<2x18x128xf32, #tpu.memory_space<vmem>>, vector<2x16x128xf32>,
    %c0_38 = arith.constant 0 : index
    %c0_39 = arith.constant 0 : index
    %c0_40 = arith.constant 0 : index
    %44 = vector.load %arg10[%c0_38, %c0_39, %c0_40] : memref<2x18x128xf32, #tpu.memory_space<vmem>>, vector<2x16x128xf32>
    %45 = vector.shape_cast %44 : vector<2x16x128xf32> to vector<32x128xf32>
    %c0_41 = arith.constant 0 : index
    %c0_42 = arith.constant 0 : index
    %c0_43 = arith.constant 0 : index
    %46 = vector.load %arg3[%c0_41, %c0_42, %c0_43] : memref<3x128x128xf32, #tpu.memory_space<vmem>>, vector<1x128x128xf32>
    %47 = vector.shape_cast %46 : vector<1x128x128xf32> to vector<128x128xf32>
    %cst_44 = arith.constant dense<0.000000e+00> : vector<32x128xf32>
    %48 = tpu.matmul %45, %47, %cst_44 {dimension_numbers = #tpu.dot_dimension_numbers<[1], [0], [0], [1], [0, 0, 1, 1], [], []>} : vector<32x128xf32>, vector<128x128xf32>, vector<32x128xf32> -> vector<32x128xf32>
    %c0_45 = arith.constant 0 : index
    %c1_46 = arith.constant 1 : index
    %c0_47 = arith.constant 0 : index
    %49 = vector.load %arg10[%c0_45, %c1_46, %c0_47] : memref<2x18x128xf32, #tpu.memory_space<vmem>>, vector<2x16x128xf32>
    %50 = vector.shape_cast %49 : vector<2x16x128xf32> to vector<32x128xf32>
    %c1_48 = arith.constant 1 : index
    %c0_49 = arith.constant 0 : index
    %c0_50 = arith.constant 0 : index
    %51 = vector.load %arg3[%c1_48, %c0_49, %c0_50] : memref<3x128x128xf32, #tpu.memory_space<vmem>>, vector<1x128x128xf32>
    %52 = vector.shape_cast %51 : vector<1x128x128xf32> to vector<128x128xf32>
    %cst_51 = arith.constant dense<0.000000e+00> : vector<32x128xf32>
    %53 = tpu.matmul %50, %52, %cst_51 {dimension_numbers = #tpu.dot_dimension_numbers<[1], [0], [0], [1], [0, 0, 1, 1], [], []>} : vector<32x128xf32>, vector<128x128xf32>, vector<32x128xf32> -> vector<32x128xf32>
    %54 = arith.addf %48, %53 : vector<32x128xf32>
    %c0_52 = arith.constant 0 : index
    %c2_53 = arith.constant 2 : index
    %c0_54 = arith.constant 0 : index
    %55 = vector.load %arg10[%c0_52, %c2_53, %c0_54] : memref<2x18x128xf32, #tpu.memory_space<vmem>>, vector<2x16x128xf32>
    %56 = vector.shape_cast %55 : vector<2x16x128xf32> to vector<32x128xf32>
    %c2_55 = arith.constant 2 : index
    %c0_56 = arith.constant 0 : index
    %c0_57 = arith.constant 0 : index
    %57 = vector.load %arg3[%c2_55, %c0_56, %c0_57] : memref<3x128x128xf32, #tpu.memory_space<vmem>>, vector<1x128x128xf32>
    %58 = vector.shape_cast %57 : vector<1x128x128xf32> to vector<128x128xf32>
    %cst_58 = arith.constant dense<0.000000e+00> : vector<32x128xf32>
    %59 = tpu.matmul %56, %58, %cst_58 {dimension_numbers = #tpu.dot_dimension_numbers<[1], [0], [0], [1], [0, 0, 1, 1], [], []>} : vector<32x128xf32>, vector<128x128xf32>, vector<32x128xf32> -> vector<32x128xf32>
    %60 = arith.addf %54, %59 : vector<32x128xf32>
    %cst_59 = arith.constant dense<0.000000e+00> : vector<32x128xf32>
    %61 = tpu.matmul %60, %0, %cst_59 {dimension_numbers = #tpu.dot_dimension_numbers<[1], [0], [0], [1], [0, 0, 1, 1], [], []>} : vector<32x128xf32>, vector<128x128xf32>, vector<32x128xf32> -> vector<32x128xf32>
    %cst_60 = arith.constant dense<0.000000e+00> : vector<128xf32>
    %62 = vector.multi_reduction <add>, %61, %cst_60 [0] : vector<32x128xf32> to vector<128xf32>
    %63 = vector.shape_cast %62 : vector<128xf32> to vector<1x128xf32>
    %64 = vector.broadcast %63 : vector<1x128xf32> to vector<32x128xf32>
    %65 = arith.subf %60, %64 : vector<32x128xf32>
    %66 = arith.mulf %65, %65 : vector<32x128xf32>
    %cst_61 = arith.constant dense<0.000000e+00> : vector<32x128xf32>
    %67 = tpu.matmul %66, %0, %cst_61 {dimension_numbers = #tpu.dot_dimension_numbers<[1], [0], [0], [1], [0, 0, 1, 1], [], []>} : vector<32x128xf32>, vector<128x128xf32>, vector<32x128xf32> -> vector<32x128xf32>
    %cst_62 = arith.constant dense<0.000000e+00> : vector<128xf32>
    %68 = vector.multi_reduction <add>, %67, %cst_62 [0] : vector<32x128xf32> to vector<128xf32>
    %69 = vector.shape_cast %68 : vector<128xf32> to vector<1x128xf32>
    %c0_63 = arith.constant 0 : index
    %c0_64 = arith.constant 0 : index
    %70 = vector.load %arg7[%c0_63, %c0_64] : memref<1x128xf32, #tpu.memory_space<vmem>>, vector<1x128xf32>
    %cst_65 = arith.constant 9.99999974E-6 : f32
    %71 = vector.broadcast %cst_65 : f32 to vector<1x128xf32>
    %72 = arith.addf %69, %71 : vector<1x128xf32>
    %73 = math.rsqrt %72 : vector<1x128xf32>
    %74 = arith.mulf %70, %73 : vector<1x128xf32>
    %75 = vector.broadcast %74 : vector<1x128xf32> to vector<32x128xf32>
    %76 = arith.mulf %65, %75 : vector<32x128xf32>
    %c0_66 = arith.constant 0 : index
    %c0_67 = arith.constant 0 : index
    %77 = vector.load %arg8[%c0_66, %c0_67] : memref<1x128xf32, #tpu.memory_space<vmem>>, vector<1x128xf32>
    %78 = vector.broadcast %77 : vector<1x128xf32> to vector<32x128xf32>
    %79 = arith.addf %76, %78 : vector<32x128xf32>
    %c0_68 = arith.constant 0 : index
    %c1_69 = arith.constant 1 : index
    %c0_70 = arith.constant 0 : index
    %80 = vector.load %arg1[%c0_68, %c1_69, %c0_70] : memref<2x18x128xf32, #tpu.memory_space<vmem>>, vector<2x16x128xf32>
    %81 = vector.shape_cast %80 : vector<2x16x128xf32> to vector<32x128xf32>
    %82 = arith.addf %79, %81 : vector<32x128xf32>
    %cst_71 = arith.constant 0.000000e+00 : f32
    %83 = vector.broadcast %cst_71 : f32 to vector<32x128xf32>
    %84 = arith.maximumf %82, %83 : vector<32x128xf32>
    %c0_72 = arith.constant 0 : index
    %c0_73 = arith.constant 0 : index
    %85 = vector.load %arg9[%c0_72, %c0_73] : memref<32x128xf32, #tpu.memory_space<vmem>>, vector<32x128xf32>
    tpu.vector_store %arg9[%c0_72, %c0_73], %84 {strides = array<i32>} : memref<32x128xf32, #tpu.memory_space<vmem>>, vector<32x128xf32>,
    return
  }
  func.func @transform_0(%arg0: i32) -> (i32, i32, i32) {
    %c0_i32 = arith.constant 0 : i32
    %c0_i32_0 = arith.constant 0 : i32
    %c0_i32_1 = arith.constant 0 : i32
    %c0_i32_2 = arith.constant 0 : i32
    return %c0_i32, %c0_i32_0, %c0_i32_1 : i32, i32, i32
  }
  func.func @transform_1(%arg0: i32) -> (i32, i32, i32) {
    %c0_i32 = arith.constant 0 : i32
    %c0_i32_0 = arith.constant 0 : i32
    %c0_i32_1 = arith.constant 0 : i32
    %c0_i32_2 = arith.constant 0 : i32
    return %c0_i32, %c0_i32_0, %c0_i32_1 : i32, i32, i32
  }
  func.func @transform_2(%arg0: i32) -> (i32, i32, i32) {
    %c0_i32 = arith.constant 0 : i32
    %c0_i32_0 = arith.constant 0 : i32
    %c0_i32_1 = arith.constant 0 : i32
    %c0_i32_2 = arith.constant 0 : i32
    return %c0_i32, %c0_i32_0, %c0_i32_1 : i32, i32, i32
  }
  func.func @transform_3(%arg0: i32) -> (i32, i32) {
    %c0_i32 = arith.constant 0 : i32
    %c0_i32_0 = arith.constant 0 : i32
    %c0_i32_1 = arith.constant 0 : i32
    return %c0_i32, %c0_i32_0 : i32, i32
  }
  func.func @transform_4(%arg0: i32) -> (i32, i32) {
    %c0_i32 = arith.constant 0 : i32
    %c0_i32_0 = arith.constant 0 : i32
    %c0_i32_1 = arith.constant 0 : i32
    return %c0_i32, %c0_i32_0 : i32, i32
  }
  func.func @transform_5(%arg0: i32) -> (i32, i32) {
    %c0_i32 = arith.constant 0 : i32
    %c0_i32_0 = arith.constant 0 : i32
    %c0_i32_1 = arith.constant 0 : i32
    return %c0_i32, %c0_i32_0 : i32, i32
  }
  func.func @transform_6(%arg0: i32) -> (i32, i32) {
    %c0_i32 = arith.constant 0 : i32
    %c0_i32_0 = arith.constant 0 : i32
    %c0_i32_1 = arith.constant 0 : i32
    return %c0_i32, %c0_i32_0 : i32, i32
  }
  func.func @transform_7(%arg0: i32) -> (i32, i32) {
    %c0_i32 = arith.constant 0 : i32
    %c0_i32_0 = arith.constant 0 : i32
    %c0_i32_1 = arith.constant 0 : i32
    return %c0_i32, %c0_i32_0 : i32, i32
  }
  func.func @transform_8(%arg0: i32) -> (i32, i32) {
    %c0_i32 = arith.constant 0 : i32
    %c0_i32_0 = arith.constant 0 : i32
    %c0_i32_1 = arith.constant 0 : i32
    return %c0_i32, %c0_i32_0 : i32, i32
  }
}

</mosaic_0001>

<llo_original>
// kernel: tpu_custom_call.1
$region0: #{tpu_custom_call.1}
  #allocation0 [shape = 'u32[]', space=smem, size = 0x4, offset = 0x4, fixed_abs, tag = 'smem constant byte address 0x4 - core index']
  #allocation1 [shape = 'u32[144,128]{1,0:T(1,128)}', space=vmem, size = 0x12000, scoped, tag = 'internal scratch']
  #allocation2 [shape = 'f32[2,18,128]{2,1,0:T(8,128)}', space=vmem, size = 0x6000, scoped, tag = 'scratch operand']
  %s0 = inlined_call_operand.vmem [shape: f32[2,18,128], index: 0, kind: input, shape index: {}]
  %s1 = inlined_call_operand.hbm [shape: f32[3,128,128], index: 1, kind: input, shape index: {}]
  %s2 = inlined_call_operand.hbm [shape: f32[3,128,128], index: 2, kind: input, shape index: {}]
  %s3 = inlined_call_operand.hbm [shape: f32[128,128], index: 3, kind: input, shape index: {}]
  %s4 = inlined_call_operand.vmem [shape: f32[1,128], index: 4, kind: input, shape index: {}]
  %s5 = inlined_call_operand.vmem [shape: f32[1,128], index: 5, kind: input, shape index: {}]
  %s6 = inlined_call_operand.vmem [shape: f32[1,128], index: 6, kind: input, shape index: {}]
  %s7 = inlined_call_operand.vmem [shape: f32[1,128], index: 7, kind: input, shape index: {}]
  %s8 = inlined_call_operand.hbm [shape: f32[32,128], index: 8, kind: output, shape index: {}]
  %s9 = sld [smem:[#allocation0]]
  $region54: #{tpu_custom_call.1} parent=0
    _
  %s11 = ssub.s32 1, %s9
  %s12 = scalar_select 0, %s11, %s9
  $region1: #{tpu_custom_call.1} parent=0
    #allocation3 [shape = 'u8[196608]{0}', space=vmem, size = 0x30000, scoped, tag = 'input window, operand 1, single buffered']
    #allocation4 [shape = 's32[1]{0}', space=sflag, size = 0x4, scoped, tag = 'scoped memory for tpu_custom_call.1']
    #allocation5 [shape = 's32[1]{0}', space=sflag, size = 0x4, scoped, tag = 'scoped memory for tpu_custom_call.1']
    #allocation6 [shape = 'u8[196608]{0}', space=vmem, size = 0x30000, scoped, tag = 'input window, operand 2, single buffered']
    #allocation7 [shape = 's32[1]{0}', space=sflag, size = 0x4, scoped, tag = 'scoped memory for tpu_custom_call.1']
    #allocation8 [shape = 'u8[65536]{0}', space=vmem, size = 0x10000, scoped, tag = 'input window, operand 3, single buffered']
    #allocation9 [shape = 'u8[16384]{0}', space=vmem, size = 0x4000, scoped, tag = 'output window, operand 0, single buffered']
    %13 = vsyncpa [#allocation4], 0
    %14 = vsyncpa [#allocation7], 0
    %15 = vsyncpa [#allocation5], 0
    // Predicated region
    $region2: #{tpu_custom_call.1} parent=1 // pred_check
      _
    $region3: #{tpu_custom_call.1} parent=1 // pred_check_branch
      %17 = sbr.rel (0) target = $region5
    $region4: #{tpu_custom_call.1} parent=1 // pred_region
      _
    $region5: #{tpu_custom_call.1} parent=1 // pred_fallthru
      _
    // Predicated region
    $region6: #{tpu_custom_call.1} parent=1 // pred_check
      _
    $region7: #{tpu_custom_call.1} parent=1 // pred_check_branch
      %19 = sbr.rel (0) target = $region9
    $region8: #{tpu_custom_call.1} parent=1 // pred_region
      %s21 = ssub.s32 6144, 6144
      %22 = vsyncadd [#allocation4], %s21
      %s23 = sshll.u32 [#allocation3], 4
      %s24 = int_to_ptr.vmem [resolvable:$true] %s23
      %29 = dma.hbm_to_vmem [thread:$0]  %s1, 6144, %s24, [#allocation4], 128, 128, 8
    $region9: #{tpu_custom_call.1} parent=1 // pred_fallthru
      _
    // Predicated region
    $region10: #{tpu_custom_call.1} parent=1 // pred_check
      _
    $region11: #{tpu_custom_call.1} parent=1 // pred_check_branch
      %31 = sbr.rel (0) target = $region13
    $region12: #{tpu_custom_call.1} parent=1 // pred_region
      %s33 = ssub.s32 6144, 6144
      %34 = vsyncadd [#allocation7], %s33
      %s35 = sshll.u32 [#allocation6], 4
      %s36 = int_to_ptr.vmem [resolvable:$true] %s35
      %41 = dma.hbm_to_vmem [thread:$0]  %s2, 6144, %s36, [#allocation7], 128, 128, 8
    $region13: #{tpu_custom_call.1} parent=1 // pred_fallthru
      _
    // Predicated region
    $region14: #{tpu_custom_call.1} parent=1 // pred_check
      _
    $region15: #{tpu_custom_call.1} parent=1 // pred_check_branch
      %43 = sbr.rel (0) target = $region17
    $region16: #{tpu_custom_call.1} parent=1 // pred_region
      %s45 = ssub.s32 2048, 2048
      %46 = vsyncadd [#allocation7], %s45
      %s47 = sshll.u32 [#allocation8], 4
      %s48 = int_to_ptr.vmem [resolvable:$true] %s47
      %53 = dma.hbm_to_vmem [thread:$0]  %s3, 2048, %s48, [#allocation7], 128, 128, 8
    $region17: #{tpu_custom_call.1} parent=1 // pred_fallthru
      _
    // Predicated region
    $region18: #{tpu_custom_call.1} parent=1 // pred_check
      _
    $region19: #{tpu_custom_call.1} parent=1 // pred_check_branch
      %55 = sbr.rel (0) target = $region21
    $region20: #{tpu_custom_call.1} parent=1 // pred_region
      _
    $region21: #{tpu_custom_call.1} parent=1 // pred_fallthru
      _
    // Predicated region
    $region22: #{tpu_custom_call.1} parent=1 // pred_check
      _
    $region23: #{tpu_custom_call.1} parent=1 // pred_check_branch
      %57 = sbr.rel (0) target = $region25
    $region24: #{tpu_custom_call.1} parent=1 // pred_region
      _
    $region25: #{tpu_custom_call.1} parent=1 // pred_fallthru
      _
    // Predicated region
    $region26: #{tpu_custom_call.1} parent=1 // pred_check
      _
    $region27: #{tpu_custom_call.1} parent=1 // pred_check_branch
      %59 = sbr.rel (0) target = $region29
    $region28: #{tpu_custom_call.1} parent=1 // pred_region
      _
    $region29: #{tpu_custom_call.1} parent=1 // pred_fallthru
      _
    // Predicated region
    $region30: #{tpu_custom_call.1} parent=1 // pred_check
      _
    $region31: #{tpu_custom_call.1} parent=1 // pred_check_branch
      %61 = sbr.rel (0) target = $region33
    $region32: #{tpu_custom_call.1} parent=1 // pred_region
      _
    $region33: #{tpu_custom_call.1} parent=1 // pred_fallthru
      _
    // Predicated region
    $region34: #{tpu_custom_call.1} parent=1 // pred_check
      _
    $region35: #{tpu_custom_call.1} parent=1 // pred_check_branch
      %63 = sbr.rel (0) target = $region37
    $region36: #{tpu_custom_call.1} parent=1 // pred_region
      %64 = dma.done [#allocation4], 6144
    $region37: #{tpu_custom_call.1} parent=1 // pred_fallthru
      _
    // Predicated region
    $region38: #{tpu_custom_call.1} parent=1 // pred_check
      _
    $region39: #{tpu_custom_call.1} parent=1 // pred_check_branch
      %66 = sbr.rel (0) target = $region41
    $region40: #{tpu_custom_call.1} parent=1 // pred_region
      %67 = dma.done [#allocation7], 6144
    $region41: #{tpu_custom_call.1} parent=1 // pred_fallthru
      _
    // Predicated region
    $region42: #{tpu_custom_call.1} parent=1 // pred_check
      _
    $region43: #{tpu_custom_call.1} parent=1 // pred_check_branch
      %69 = sbr.rel (0) target = $region45
    $region44: #{tpu_custom_call.1} parent=1 // pred_region
      %70 = dma.done [#allocation7], 2048
    $region45: #{tpu_custom_call.1} parent=1 // pred_fallthru
      _
    %v71 = vld [vmem:[#allocation8] sm:$0xff]
    %v72 = vld [vmem:[#allocation8 + $0x8] sm:$0xff]
    %v73 = vld [vmem:[#allocation8 + $0x10] sm:$0xff]
    %v74 = vld [vmem:[#allocation8 + $0x18] sm:$0xff]
    %v75 = vld [vmem:[#allocation8 + $0x20] sm:$0xff]
    %v76 = vld [vmem:[#allocation8 + $0x28] sm:$0xff]
    %v77 = vld [vmem:[#allocation8 + $0x30] sm:$0xff]
    %v78 = vld [vmem:[#allocation8 + $0x38] sm:$0xff]
    %v79 = vld [vmem:[#allocation8 + $0x40] sm:$0xff]
    %v80 = vld [vmem:[#allocation8 + $0x48] sm:$0xff]
    %v81 = vld [vmem:[#allocation8 + $0x50] sm:$0xff]
    %v82 = vld [vmem:[#allocation8 + $0x58] sm:$0xff]
    %v83 = vld [vmem:[#allocation8 + $0x60] sm:$0xff]
    %v84 = vld [vmem:[#allocation8 + $0x68] sm:$0xff]
    %v85 = vld [vmem:[#allocation8 + $0x70] sm:$0xff]
    %v86 = vld [vmem:[#allocation8 + $0x78] sm:$0xff]
    %v87 = vld [vmem:[%s0] sm:$0xff]
    %v88 = vld [vmem:[%s0 + $0x8] sm:$0xff]
    %v89 = vld [vmem:[%s0 + $0x18] sm:$0xff]
    %v90 = vld [vmem:[%s0 + $0x20] sm:$0xff]
    %v91 = vld [vmem:[#allocation3] sm:$0xff]
    %v92 = vld [vmem:[#allocation3 + $0x8] sm:$0xff]
    %v93 = vld [vmem:[#allocation3 + $0x10] sm:$0xff]
    %v94 = vld [vmem:[#allocation3 + $0x18] sm:$0xff]
    %v95 = vld [vmem:[#allocation3 + $0x20] sm:$0xff]
    %v96 = vld [vmem:[#allocation3 + $0x28] sm:$0xff]
    %v97 = vld [vmem:[#allocation3 + $0x30] sm:$0xff]
    %v98 = vld [vmem:[#allocation3 + $0x38] sm:$0xff]
    %v99 = vld [vmem:[#allocation3 + $0x40] sm:$0xff]
    %v100 = vld [vmem:[#allocation3 + $0x48] sm:$0xff]
    %v101 = vld [vmem:[#allocation3 + $0x50] sm:$0xff]
    %v102 = vld [vmem:[#allocation3 + $0x58] sm:$0xff]
    %v103 = vld [vmem:[#allocation3 + $0x60] sm:$0xff]
    %v104 = vld [vmem:[#allocation3 + $0x68] sm:$0xff]
    %v105 = vld [vmem:[#allocation3 + $0x70] sm:$0xff]
    %v106 = vld [vmem:[#allocation3 + $0x78] sm:$0xff]
    %v107 = vld [vmem:[%s0 + $0x1] sm:$0xff]
    %v108 = vld [vmem:[%s0 + $0x9] sm:$0xff]
    %v109 = vld [vmem:[%s0 + $0x19] sm:$0xff]
    %v110 = vld [vmem:[%s0 + $0x21] sm:$0xff]
    %s111 = scalar_lea.vmem [#allocation3], 128
    %v112 = vld [vmem:[%s111] sm:$0xff]
    %v113 = vld [vmem:[%s111 + $0x8] sm:$0xff]
    %v114 = vld [vmem:[%s111 + $0x10] sm:$0xff]
    %v115 = vld [vmem:[%s111 + $0x18] sm:$0xff]
    %v116 = vld [vmem:[%s111 + $0x20] sm:$0xff]
    %v117 = vld [vmem:[%s111 + $0x28] sm:$0xff]
    %v118 = vld [vmem:[%s111 + $0x30] sm:$0xff]
    %v119 = vld [vmem:[%s111 + $0x38] sm:$0xff]
    %v120 = vld [vmem:[%s111 + $0x40] sm:$0xff]
    %v121 = vld [vmem:[%s111 + $0x48] sm:$0xff]
    %v122 = vld [vmem:[%s111 + $0x50] sm:$0xff]
    %v123 = vld [vmem:[%s111 + $0x58] sm:$0xff]
    %v124 = vld [vmem:[%s111 + $0x60] sm:$0xff]
    %v125 = vld [vmem:[%s111 + $0x68] sm:$0xff]
    %v126 = vld [vmem:[%s111 + $0x70] sm:$0xff]
    %v127 = vld [vmem:[%s111 + $0x78] sm:$0xff]
    %128 = vmatprep.subr.mxu0 0.0
    %129 = vmatpush1.msra.mxu0 %v127
    %130 = vmatprep.subr.mxu0 0.0
    %131 = vmatpush1.msra.mxu0 %v126
    %132 = vmatprep.subr.mxu0 0.0
    %133 = vmatpush1.msra.mxu0 %v125
    %134 = vmatprep.subr.mxu0 0.0
    %135 = vmatpush1.msra.mxu0 %v124
    %136 = vmatprep.subr.mxu0 0.0
    %137 = vmatpush1.msra.mxu0 %v123
    %138 = vmatprep.subr.mxu0 0.0
    %139 = vmatpush1.msra.mxu0 %v122
    %140 = vmatprep.subr.mxu0 0.0
    %141 = vmatpush1.msra.mxu0 %v121
    %142 = vmatprep.subr.mxu0 0.0
    %143 = vmatpush1.msra.mxu0 %v120
    %144 = vmatprep.subr.mxu0 0.0
    %145 = vmatpush1.msra.mxu0 %v119
    %146 = vmatprep.subr.mxu0 0.0
    %147 = vmatpush1.msra.mxu0 %v118
    %148 = vmatprep.subr.mxu0 0.0
    %149 = vmatpush1.msra.mxu0 %v117
    %150 = vmatprep.subr.mxu0 0.0
    %151 = vmatpush1.msra.mxu0 %v116
    %152 = vmatprep.subr.mxu0 0.0
    %153 = vmatpush1.msra.mxu0 %v115
    %154 = vmatprep.subr.mxu0 0.0
    %155 = vmatpush1.msra.mxu0 %v114
    %156 = vmatprep.subr.mxu0 0.0
    %157 = vmatpush1.msra.mxu0 %v113
    %158 = vmatprep.subr.mxu0 0.0
    %159 = vmatpush1.msra.mxu0 %v112
    %160 = vmatprep.subr.mxu0 0.0
    %161 = vmatpush2.msra.mxu0 0.0
    %162 = vmatprep.subr.mxu0 0.0
    %163 = vmatpush2.msra.mxu0 0.0
    %164 = vmatprep.subr.mxu0 0.0
    %165 = vmatpush2.msra.mxu0 0.0
    %166 = vmatprep.subr.mxu0 0.0
    %167 = vmatpush2.msra.mxu0 0.0
    %168 = vmatprep.subr.mxu0 0.0
    %169 = vmatpush2.msra.mxu0 0.0
    %170 = vmatprep.subr.mxu0 0.0
    %171 = vmatpush2.msra.mxu0 0.0
    %172 = vmatprep.subr.mxu0 0.0
    %173 = vmatpush2.msra.mxu0 0.0
    %174 = vmatprep.subr.mxu0 0.0
    %175 = vmatpush2.msra.mxu0 0.0
    %176 = vmatprep.subr.mxu0 0.0
    %177 = vmatpush2.msra.mxu0 0.0
    %178 = vmatprep.subr.mxu0 0.0
    %179 = vmatpush2.msra.mxu0 0.0
    %180 = vmatprep.subr.mxu0 0.0
    %181 = vmatpush2.msra.mxu0 0.0
    %182 = vmatprep.subr.mxu0 0.0
    %183 = vmatpush2.msra.mxu0 0.0
    %184 = vmatprep.subr.mxu0 0.0
    %185 = vmatpush2.msra.mxu0 0.0
    %186 = vmatprep.subr.mxu0 0.0
    %187 = vmatpush2.msra.mxu0 0.0
    %188 = vmatprep.subr.mxu0 0.0
    %189 = vmatpush2.msra.mxu0 0.0
    %190 = vmatprep.subr.mxu0 0.0
    %191 = vmatpush2.msra.mxu0 0.0
    %192 = vmatprep.mubr.f32.mxu0 0.0
    %193 = vmatmul.mubr.f32.gmra.mxu0 %v107
    %v194 = vpop.f32.mrf.mxu0
    %v195 = vadd.f32 0.0, %v194
    %v196 = vpop.f32.mrf.mxu0
    %197 = vmatprep.mubr.f32.mxu0 0.0
    %198 = vmatmul.mubr.f32.gmra.mxu0 %v108
    %v199 = vpop.f32.mrf.mxu0
    %v200 = vadd.f32 0.0, %v199
    %v201 = vpop.f32.mrf.mxu0
    %202 = vmatprep.mubr.f32.mxu0 0.0
    %203 = vmatmul.mubr.f32.gmra.mxu0 %v109
    %v204 = vpop.f32.mrf.mxu0
    %v205 = vadd.f32 0.0, %v204
    %v206 = vpop.f32.mrf.mxu0
    %207 = vmatprep.mubr.f32.mxu0 0.0
    %208 = vmatmul.mubr.f32.gmra.mxu0 %v110
    %v209 = vpop.f32.mrf.mxu0
    %v210 = vadd.f32 0.0, %v209
    %v211 = vpop.f32.mrf.mxu0
    %212 = vdwg.mxu0
    %213 = vmatprep.subr.mxu0 0.0
    %214 = vmatpush1.msra.mxu0 %v106
    %215 = vmatprep.subr.mxu0 0.0
    %216 = vmatpush1.msra.mxu0 %v105
    %217 = vmatprep.subr.mxu0 0.0
    %218 = vmatpush1.msra.mxu0 %v104
    %219 = vmatprep.subr.mxu0 0.0
    %220 = vmatpush1.msra.mxu0 %v103
    %221 = vmatprep.subr.mxu0 0.0
    %222 = vmatpush1.msra.mxu0 %v102
    %223 = vmatprep.subr.mxu0 0.0
    %224 = vmatpush1.msra.mxu0 %v101
    %225 = vmatprep.subr.mxu0 0.0
    %226 = vmatpush1.msra.mxu0 %v100
    %227 = vmatprep.subr.mxu0 0.0
    %228 = vmatpush1.msra.mxu0 %v99
    %229 = vmatprep.subr.mxu0 0.0
    %230 = vmatpush1.msra.mxu0 %v98
    %231 = vmatprep.subr.mxu0 0.0
    %232 = vmatpush1.msra.mxu0 %v97
    %233 = vmatprep.subr.mxu0 0.0
    %234 = vmatpush1.msra.mxu0 %v96
    %235 = vmatprep.subr.mxu0 0.0
    %236 = vmatpush1.msra.mxu0 %v95
    %237 = vmatprep.subr.mxu0 0.0
    %238 = vmatpush1.msra.mxu0 %v94
    %239 = vmatprep.subr.mxu0 0.0
    %240 = vmatpush1.msra.mxu0 %v93
    %241 = vmatprep.subr.mxu0 0.0
    %242 = vmatpush1.msra.mxu0 %v92
    %243 = vmatprep.subr.mxu0 0.0
    %244 = vmatpush1.msra.mxu0 %v91
    %245 = vmatprep.subr.mxu0 0.0
    %246 = vmatpush2.msra.mxu0 0.0
    %247 = vmatprep.subr.mxu0 0.0
    %248 = vmatpush2.msra.mxu0 0.0
    %249 = vmatprep.subr.mxu0 0.0
    %250 = vmatpush2.msra.mxu0 0.0
    %251 = vmatprep.subr.mxu0 0.0
    %252 = vmatpush2.msra.mxu0 0.0
    %253 = vmatprep.subr.mxu0 0.0
    %254 = vmatpush2.msra.mxu0 0.0
    %255 = vmatprep.subr.mxu0 0.0
    %256 = vmatpush2.msra.mxu0 0.0
    %257 = vmatprep.subr.mxu0 0.0
    %258 = vmatpush2.msra.mxu0 0.0
    %259 = vmatprep.subr.mxu0 0.0
    %260 = vmatpush2.msra.mxu0 0.0
    %261 = vmatprep.subr.mxu0 0.0
    %262 = vmatpush2.msra.mxu0 0.0
    %263 = vmatprep.subr.mxu0 0.0
    %264 = vmatpush2.msra.mxu0 0.0
    %265 = vmatprep.subr.mxu0 0.0
    %266 = vmatpush2.msra.mxu0 0.0
    %267 = vmatprep.subr.mxu0 0.0
    %268 = vmatpush2.msra.mxu0 0.0
    %269 = vmatprep.subr.mxu0 0.0
    %270 = vmatpush2.msra.mxu0 0.0
    %271 = vmatprep.subr.mxu0 0.0
    %272 = vmatpush2.msra.mxu0 0.0
    %273 = vmatprep.subr.mxu0 0.0
    %274 = vmatpush2.msra.mxu0 0.0
    %275 = vmatprep.subr.mxu0 0.0
    %276 = vmatpush2.msra.mxu0 0.0
    %277 = vmatprep.mubr.f32.mxu0 0.0
    %278 = vmatmul.mubr.f32.gmra.mxu0 %v87
    %v279 = vpop.f32.mrf.mxu0
    %v280 = vadd.f32 %v195, %v279
    %v281 = vpop.f32.mrf.mxu0
    %282 = vmatprep.mubr.f32.mxu0 0.0
    %283 = vmatmul.mubr.f32.gmra.mxu0 %v88
    %v284 = vpop.f32.mrf.mxu0
    %v285 = vadd.f32 %v200, %v284
    %v286 = vpop.f32.mrf.mxu0
    %287 = vmatprep.mubr.f32.mxu0 0.0
    %288 = vmatmul.mubr.f32.gmra.mxu0 %v89
    %v289 = vpop.f32.mrf.mxu0
    %v290 = vadd.f32 %v205, %v289
    %v291 = vpop.f32.mrf.mxu0
    %292 = vmatprep.mubr.f32.mxu0 0.0
    %293 = vmatmul.mubr.f32.gmra.mxu0 %v90
    %v294 = vpop.f32.mrf.mxu0
    %v295 = vadd.f32 %v210, %v294
    %v296 = vpop.f32.mrf.mxu0
    %297 = vdwg.mxu0
    %v298 = vld [vmem:[%s0 + $0x2] sm:$0xff]
    %v299 = vld [vmem:[%s0 + $0xa] sm:$0xff]
    %v300 = vld [vmem:[%s0 + $0x1a] sm:$0xff]
    %v301 = vld [vmem:[%s0 + $0x22] sm:$0xff]
    %s302 = scalar_lea.vmem [#allocation3], 256
    %v303 = vld [vmem:[%s302] sm:$0xff]
    %v304 = vld [vmem:[%s302 + $0x8] sm:$0xff]
    %v305 = vld [vmem:[%s302 + $0x10] sm:$0xff]
    %v306 = vld [vmem:[%s302 + $0x18] sm:$0xff]
    %v307 = vld [vmem:[%s302 + $0x20] sm:$0xff]
    %v308 = vld [vmem:[%s302 + $0x28] sm:$0xff]
    %v309 = vld [vmem:[%s302 + $0x30] sm:$0xff]
    %v310 = vld [vmem:[%s302 + $0x38] sm:$0xff]
    %v311 = vld [vmem:[%s302 + $0x40] sm:$0xff]
    %v312 = vld [vmem:[%s302 + $0x48] sm:$0xff]
    %v313 = vld [vmem:[%s302 + $0x50] sm:$0xff]
    %v314 = vld [vmem:[%s302 + $0x58] sm:$0xff]
    %v315 = vld [vmem:[%s302 + $0x60] sm:$0xff]
    %v316 = vld [vmem:[%s302 + $0x68] sm:$0xff]
    %v317 = vld [vmem:[%s302 + $0x70] sm:$0xff]
    %v318 = vld [vmem:[%s302 + $0x78] sm:$0xff]
    %319 = vmatprep.subr.mxu0 0.0
    %320 = vmatpush1.msra.mxu0 %v318
    %321 = vmatprep.subr.mxu0 0.0
    %322 = vmatpush1.msra.mxu0 %v317
    %323 = vmatprep.subr.mxu0 0.0
    %324 = vmatpush1.msra.mxu0 %v316
    %325 = vmatprep.subr.mxu0 0.0
    %326 = vmatpush1.msra.mxu0 %v315
    %327 = vmatprep.subr.mxu0 0.0
    %328 = vmatpush1.msra.mxu0 %v314
    %329 = vmatprep.subr.mxu0 0.0
    %330 = vmatpush1.msra.mxu0 %v313
    %331 = vmatprep.subr.mxu0 0.0
    %332 = vmatpush1.msra.mxu0 %v312
    %333 = vmatprep.subr.mxu0 0.0
    %334 = vmatpush1.msra.mxu0 %v311
    %335 = vmatprep.subr.mxu0 0.0
    %336 = vmatpush1.msra.mxu0 %v310
    %337 = vmatprep.subr.mxu0 0.0
    %338 = vmatpush1.msra.mxu0 %v309
    %339 = vmatprep.subr.mxu0 0.0
    %340 = vmatpush1.msra.mxu0 %v308
    %341 = vmatprep.subr.mxu0 0.0
    %342 = vmatpush1.msra.mxu0 %v307
    %343 = vmatprep.subr.mxu0 0.0
    %344 = vmatpush1.msra.mxu0 %v306
    %345 = vmatprep.subr.mxu0 0.0
    %346 = vmatpush1.msra.mxu0 %v305
    %347 = vmatprep.subr.mxu0 0.0
    %348 = vmatpush1.msra.mxu0 %v304
    %349 = vmatprep.subr.mxu0 0.0
    %350 = vmatpush1.msra.mxu0 %v303
    %351 = vmatprep.subr.mxu0 0.0
    %352 = vmatpush2.msra.mxu0 0.0
    %353 = vmatprep.subr.mxu0 0.0
    %354 = vmatpush2.msra.mxu0 0.0
    %355 = vmatprep.subr.mxu0 0.0
    %356 = vmatpush2.msra.mxu0 0.0
    %357 = vmatprep.subr.mxu0 0.0
    %358 = vmatpush2.msra.mxu0 0.0
    %359 = vmatprep.subr.mxu0 0.0
    %360 = vmatpush2.msra.mxu0 0.0
    %361 = vmatprep.subr.mxu0 0.0
    %362 = vmatpush2.msra.mxu0 0.0
    %363 = vmatprep.subr.mxu0 0.0
    %364 = vmatpush2.msra.mxu0 0.0
    %365 = vmatprep.subr.mxu0 0.0
    %366 = vmatpush2.msra.mxu0 0.0
    %367 = vmatprep.subr.mxu0 0.0
    %368 = vmatpush2.msra.mxu0 0.0
    %369 = vmatprep.subr.mxu0 0.0
    %370 = vmatpush2.msra.mxu0 0.0
    %371 = vmatprep.subr.mxu0 0.0
    %372 = vmatpush2.msra.mxu0 0.0
    %373 = vmatprep.subr.mxu0 0.0
    %374 = vmatpush2.msra.mxu0 0.0
    %375 = vmatprep.subr.mxu0 0.0
    %376 = vmatpush2.msra.mxu0 0.0
    %377 = vmatprep.subr.mxu0 0.0
    %378 = vmatpush2.msra.mxu0 0.0
    %379 = vmatprep.subr.mxu0 0.0
    %380 = vmatpush2.msra.mxu0 0.0
    %381 = vmatprep.subr.mxu0 0.0
    %382 = vmatpush2.msra.mxu0 0.0
    %383 = vmatprep.mubr.f32.mxu0 0.0
    %384 = vmatmul.mubr.f32.gmra.mxu0 %v298
    %v385 = vpop.f32.mrf.mxu0
    %v386 = vadd.f32 0.0, %v385
    %v387 = vpop.f32.mrf.mxu0
    %388 = vmatprep.mubr.f32.mxu0 0.0
    %389 = vmatmul.mubr.f32.gmra.mxu0 %v299
    %v390 = vpop.f32.mrf.mxu0
    %v391 = vadd.f32 0.0, %v390
    %v392 = vpop.f32.mrf.mxu0
    %393 = vmatprep.mubr.f32.mxu0 0.0
    %394 = vmatmul.mubr.f32.gmra.mxu0 %v300
    %v395 = vpop.f32.mrf.mxu0
    %v396 = vadd.f32 0.0, %v395
    %v397 = vpop.f32.mrf.mxu0
    %398 = vmatprep.mubr.f32.mxu0 0.0
    %399 = vmatmul.mubr.f32.gmra.mxu0 %v301
    %v400 = vpop.f32.mrf.mxu0
    %v401 = vadd.f32 0.0, %v400
    %v402 = vpop.f32.mrf.mxu0
    %403 = vdwg.mxu0
    %v404 = vadd.f32 %v280, %v386
    %v405 = vadd.f32 %v285, %v391
    %v406 = vadd.f32 %v290, %v396
    %v407 = vadd.f32 %v295, %v401
    %408 = vmatprep.subr.mxu0 0.0
    %409 = vmatpush1.msra.mxu0 %v86
    %410 = vmatprep.subr.mxu0 0.0
    %411 = vmatpush1.msra.mxu0 %v85
    %412 = vmatprep.subr.mxu0 0.0
    %413 = vmatpush1.msra.mxu0 %v84
    %414 = vmatprep.subr.mxu0 0.0
    %415 = vmatpush1.msra.mxu0 %v83
    %416 = vmatprep.subr.mxu0 0.0
    %417 = vmatpush1.msra.mxu0 %v82
    %418 = vmatprep.subr.mxu0 0.0
    %419 = vmatpush1.msra.mxu0 %v81
    %420 = vmatprep.subr.mxu0 0.0
    %421 = vmatpush1.msra.mxu0 %v80
    %422 = vmatprep.subr.mxu0 0.0
    %423 = vmatpush1.msra.mxu0 %v79
    %424 = vmatprep.subr.mxu0 0.0
    %425 = vmatpush1.msra.mxu0 %v78
    %426 = vmatprep.subr.mxu0 0.0
    %427 = vmatpush1.msra.mxu0 %v77
    %428 = vmatprep.subr.mxu0 0.0
    %429 = vmatpush1.msra.mxu0 %v76
    %430 = vmatprep.subr.mxu0 0.0
    %431 = vmatpush1.msra.mxu0 %v75
    %432 = vmatprep.subr.mxu0 0.0
    %433 = vmatpush1.msra.mxu0 %v74
    %434 = vmatprep.subr.mxu0 0.0
    %435 = vmatpush1.msra.mxu0 %v73
    %436 = vmatprep.subr.mxu0 0.0
    %437 = vmatpush1.msra.mxu0 %v72
    %438 = vmatprep.subr.mxu0 0.0
    %439 = vmatpush1.msra.mxu0 %v71
    %440 = vmatprep.subr.mxu0 0.0
    %441 = vmatpush2.msra.mxu0 0.0
    %442 = vmatprep.subr.mxu0 0.0
    %443 = vmatpush2.msra.mxu0 0.0
    %444 = vmatprep.subr.mxu0 0.0
    %445 = vmatpush2.msra.mxu0 0.0
    %446 = vmatprep.subr.mxu0 0.0
    %447 = vmatpush2.msra.mxu0 0.0
    %448 = vmatprep.subr.mxu0 0.0
    %449 = vmatpush2.msra.mxu0 0.0
    %450 = vmatprep.subr.mxu0 0.0
    %451 = vmatpush2.msra.mxu0 0.0
    %452 = vmatprep.subr.mxu0 0.0
    %453 = vmatpush2.msra.mxu0 0.0
    %454 = vmatprep.subr.mxu0 0.0
    %455 = vmatpush2.msra.mxu0 0.0
    %456 = vmatprep.subr.mxu0 0.0
    %457 = vmatpush2.msra.mxu0 0.0
    %458 = vmatprep.subr.mxu0 0.0
    %459 = vmatpush2.msra.mxu0 0.0
    %460 = vmatprep.subr.mxu0 0.0
    %461 = vmatpush2.msra.mxu0 0.0
    %462 = vmatprep.subr.mxu0 0.0
    %463 = vmatpush2.msra.mxu0 0.0
    %464 = vmatprep.subr.mxu0 0.0
    %465 = vmatpush2.msra.mxu0 0.0
    %466 = vmatprep.subr.mxu0 0.0
    %467 = vmatpush2.msra.mxu0 0.0
    %468 = vmatprep.subr.mxu0 0.0
    %469 = vmatpush2.msra.mxu0 0.0
    %470 = vmatprep.subr.mxu0 0.0
    %471 = vmatpush2.msra.mxu0 0.0
    %472 = vmatprep.mubr.f32.mxu0 0.0
    %473 = vmatmul.mubr.f32.gmra.mxu0 %v404
    %v474 = vpop.f32.mrf.mxu0
    %v475 = vadd.f32 0.0, %v474
    %v476 = vpop.f32.mrf.mxu0
    %477 = vmatprep.mubr.f32.mxu0 0.0
    %478 = vmatmul.mubr.f32.gmra.mxu0 %v405
    %v479 = vpop.f32.mrf.mxu0
    %v480 = vadd.f32 0.0, %v479
    %v481 = vpop.f32.mrf.mxu0
    %482 = vmatprep.mubr.f32.mxu0 0.0
    %483 = vmatmul.mubr.f32.gmra.mxu0 %v406
    %v484 = vpop.f32.mrf.mxu0
    %v485 = vadd.f32 0.0, %v484
    %v486 = vpop.f32.mrf.mxu0
    %487 = vmatprep.mubr.f32.mxu0 0.0
    %488 = vmatmul.mubr.f32.gmra.mxu0 %v407
    %v489 = vpop.f32.mrf.mxu0
    %v490 = vadd.f32 0.0, %v489
    %v491 = vpop.f32.mrf.mxu0
    %492 = vdwg.mxu0
    %v493 = vadd.f32 %v475, %v480
    %v494 = vadd.f32 %v493, %v485
    %v495 = vadd.f32 %v494, %v490
    %v496 = vrot.slane %v495, 4
    %v497 = vadd.f32 %v495, %v496
    %v498 = vrot.slane %v497, 2
    %v499 = vadd.f32 %v497, %v498
    %v500 = vrot.slane %v499, 1
    %v501 = vadd.f32 %v499, %v500
    %v502 = vsub.f32 %v404, %v501
    %v503 = vsub.f32 %v405, %v501
    %v504 = vsub.f32 %v406, %v501
    %v505 = vsub.f32 %v407, %v501
    %v506 = vmul.f32 %v502, %v502
    %v507 = vmul.f32 %v503, %v503
    %v508 = vmul.f32 %v504, %v504
    %v509 = vmul.f32 %v505, %v505
    %510 = vmatprep.subr.mxu0 0.0
    %511 = vmatpush1.msra.mxu0 %v86
    %512 = vmatprep.subr.mxu0 0.0
    %513 = vmatpush1.msra.mxu0 %v85
    %514 = vmatprep.subr.mxu0 0.0
    %515 = vmatpush1.msra.mxu0 %v84
    %516 = vmatprep.subr.mxu0 0.0
    %517 = vmatpush1.msra.mxu0 %v83
    %518 = vmatprep.subr.mxu0 0.0
    %519 = vmatpush1.msra.mxu0 %v82
    %520 = vmatprep.subr.mxu0 0.0
    %521 = vmatpush1.msra.mxu0 %v81
    %522 = vmatprep.subr.mxu0 0.0
    %523 = vmatpush1.msra.mxu0 %v80
    %524 = vmatprep.subr.mxu0 0.0
    %525 = vmatpush1.msra.mxu0 %v79
    %526 = vmatprep.subr.mxu0 0.0
    %527 = vmatpush1.msra.mxu0 %v78
    %528 = vmatprep.subr.mxu0 0.0
    %529 = vmatpush1.msra.mxu0 %v77
    %530 = vmatprep.subr.mxu0 0.0
    %531 = vmatpush1.msra.mxu0 %v76
    %532 = vmatprep.subr.mxu0 0.0
    %533 = vmatpush1.msra.mxu0 %v75
    %534 = vmatprep.subr.mxu0 0.0
    %535 = vmatpush1.msra.mxu0 %v74
    %536 = vmatprep.subr.mxu0 0.0
    %537 = vmatpush1.msra.mxu0 %v73
    %538 = vmatprep.subr.mxu0 0.0
    %539 = vmatpush1.msra.mxu0 %v72
    %540 = vmatprep.subr.mxu0 0.0
    %541 = vmatpush1.msra.mxu0 %v71
    %542 = vmatprep.subr.mxu0 0.0
    %543 = vmatpush2.msra.mxu0 0.0
    %544 = vmatprep.subr.mxu0 0.0
    %545 = vmatpush2.msra.mxu0 0.0
    %546 = vmatprep.subr.mxu0 0.0
    %547 = vmatpush2.msra.mxu0 0.0
    %548 = vmatprep.subr.mxu0 0.0
    %549 = vmatpush2.msra.mxu0 0.0
    %550 = vmatprep.subr.mxu0 0.0
    %551 = vmatpush2.msra.mxu0 0.0
    %552 = vmatprep.subr.mxu0 0.0
    %553 = vmatpush2.msra.mxu0 0.0
    %554 = vmatprep.subr.mxu0 0.0
    %555 = vmatpush2.msra.mxu0 0.0
    %556 = vmatprep.subr.mxu0 0.0
    %557 = vmatpush2.msra.mxu0 0.0
    %558 = vmatprep.subr.mxu0 0.0
    %559 = vmatpush2.msra.mxu0 0.0
    %560 = vmatprep.subr.mxu0 0.0
    %561 = vmatpush2.msra.mxu0 0.0
    %562 = vmatprep.subr.mxu0 0.0
    %563 = vmatpush2.msra.mxu0 0.0
    %564 = vmatprep.subr.mxu0 0.0
    %565 = vmatpush2.msra.mxu0 0.0
    %566 = vmatprep.subr.mxu0 0.0
    %567 = vmatpush2.msra.mxu0 0.0
    %568 = vmatprep.subr.mxu0 0.0
    %569 = vmatpush2.msra.mxu0 0.0
    %570 = vmatprep.subr.mxu0 0.0
    %571 = vmatpush2.msra.mxu0 0.0
    %572 = vmatprep.subr.mxu0 0.0
    %573 = vmatpush2.msra.mxu0 0.0
    %574 = vmatprep.mubr.f32.mxu0 0.0
    %575 = vmatmul.mubr.f32.gmra.mxu0 %v506
    %v576 = vpop.f32.mrf.mxu0
    %v577 = vadd.f32 0.0, %v576
    %v578 = vpop.f32.mrf.mxu0
    %579 = vmatprep.mubr.f32.mxu0 0.0
    %580 = vmatmul.mubr.f32.gmra.mxu0 %v507
    %v581 = vpop.f32.mrf.mxu0
    %v582 = vadd.f32 0.0, %v581
    %v583 = vpop.f32.mrf.mxu0
    %584 = vmatprep.mubr.f32.mxu0 0.0
    %585 = vmatmul.mubr.f32.gmra.mxu0 %v508
    %v586 = vpop.f32.mrf.mxu0
    %v587 = vadd.f32 0.0, %v586
    %v588 = vpop.f32.mrf.mxu0
    %589 = vmatprep.mubr.f32.mxu0 0.0
    %590 = vmatmul.mubr.f32.gmra.mxu0 %v509
    %v591 = vpop.f32.mrf.mxu0
    %v592 = vadd.f32 0.0, %v591
    %v593 = vpop.f32.mrf.mxu0
    %594 = vdwg.mxu0
    %v595 = vadd.f32 %v577, %v582
    %v596 = vadd.f32 %v595, %v587
    %v597 = vadd.f32 %v596, %v592
    %v598 = vrot.slane %v597, 4
    %v599 = vadd.f32 %v597, %v598
    %v600 = vrot.slane %v599, 2
    %v601 = vadd.f32 %v599, %v600
    %v602 = vrot.slane %v601, 1
    %v603 = vadd.f32 %v601, %v602
    %v604 = vld [vmem:[%s4] sm:$0x1]
    %v605 = vadd.f32 %v603, 1e-05
    %v606 = vrsqrt.pop %v605
    %v607 = vmul.f32 %v604, %v606
    %v609 = vlaneseq
    %v610 = vshrl.u32 %v609, 7
    %v611 = vsub.s32 0, %v610
    %v612 = vrot.slane %v607, %v611
    %v614 = vmul.f32 %v502, %v612
    %v615 = vmul.f32 %v503, %v612
    %v616 = vmul.f32 %v504, %v612
    %v617 = vmul.f32 %v505, %v612
    %v618 = vld [vmem:[%s5] sm:$0x1]
    %v620 = vlaneseq
    %v621 = vshrl.u32 %v620, 7
    %v622 = vsub.s32 0, %v621
    %v623 = vrot.slane %v618, %v622
    %v625 = vadd.f32 %v614, %v623
    %v626 = vadd.f32 %v615, %v623
    %v627 = vadd.f32 %v616, %v623
    %v628 = vadd.f32 %v617, %v623
    %v629 = vmax.f32 %v625, 0.0
    %v630 = vmax.f32 %v626, 0.0
    %v631 = vmax.f32 %v627, 0.0
    %v632 = vmax.f32 %v628, 0.0
    %633 = vst [vmem:[#allocation2] sm:$0x1] 0.0
    %634 = vst [vmem:[#allocation2 + $0x18] sm:$0x1] 0.0
    %635 = vst [vmem:[#allocation2 + $0x11] sm:$0x1] 0.0
    %636 = vst [vmem:[#allocation2 + $0x29] sm:$0x1] 0.0
    %637 = vst [vmem:[#allocation2 + $0x1] sm:$0xff] %v629
    %638 = vst [vmem:[#allocation2 + $0x9] sm:$0xff] %v630
    %639 = vst [vmem:[#allocation2 + $0x19] sm:$0xff] %v631
    %640 = vst [vmem:[#allocation2 + $0x21] sm:$0xff] %v632
    %v641 = vld [vmem:[#allocation2] sm:$0xff]
    %v642 = vld [vmem:[#allocation2 + $0x8] sm:$0xff]
    %v643 = vld [vmem:[#allocation2 + $0x18] sm:$0xff]
    %v644 = vld [vmem:[#allocation2 + $0x20] sm:$0xff]
    %v645 = vld [vmem:[#allocation6] sm:$0xff]
    %v646 = vld [vmem:[#allocation6 + $0x8] sm:$0xff]
    %v647 = vld [vmem:[#allocation6 + $0x10] sm:$0xff]
    %v648 = vld [vmem:[#allocation6 + $0x18] sm:$0xff]
    %v649 = vld [vmem:[#allocation6 + $0x20] sm:$0xff]
    %v650 = vld [vmem:[#allocation6 + $0x28] sm:$0xff]
    %v651 = vld [vmem:[#allocation6 + $0x30] sm:$0xff]
    %v652 = vld [vmem:[#allocation6 + $0x38] sm:$0xff]
    %v653 = vld [vmem:[#allocation6 + $0x40] sm:$0xff]
    %v654 = vld [vmem:[#allocation6 + $0x48] sm:$0xff]
    %v655 = vld [vmem:[#allocation6 + $0x50] sm:$0xff]
    %v656 = vld [vmem:[#allocation6 + $0x58] sm:$0xff]
    %v657 = vld [vmem:[#allocation6 + $0x60] sm:$0xff]
    %v658 = vld [vmem:[#allocation6 + $0x68] sm:$0xff]
    %v659 = vld [vmem:[#allocation6 + $0x70] sm:$0xff]
    %v660 = vld [vmem:[#allocation6 + $0x78] sm:$0xff]
    %v661 = vld [vmem:[#allocation2 + $0x1] sm:$0xff]
    %v662 = vld [vmem:[#allocation2 + $0x9] sm:$0xff]
    %v663 = vld [vmem:[#allocation2 + $0x19] sm:$0xff]
    %v664 = vld [vmem:[#allocation2 + $0x21] sm:$0xff]
    %s665 = scalar_lea.vmem [#allocation6], 128
    %v666 = vld [vmem:[%s665] sm:$0xff]
    %v667 = vld [vmem:[%s665 + $0x8] sm:$0xff]
    %v668 = vld [vmem:[%s665 + $0x10] sm:$0xff]
    %v669 = vld [vmem:[%s665 + $0x18] sm:$0xff]
    %v670 = vld [vmem:[%s665 + $0x20] sm:$0xff]
    %v671 = vld [vmem:[%s665 + $0x28] sm:$0xff]
    %v672 = vld [vmem:[%s665 + $0x30] sm:$0xff]
    %v673 = vld [vmem:[%s665 + $0x38] sm:$0xff]
    %v674 = vld [vmem:[%s665 + $0x40] sm:$0xff]
    %v675 = vld [vmem:[%s665 + $0x48] sm:$0xff]
    %v676 = vld [vmem:[%s665 + $0x50] sm:$0xff]
    %v677 = vld [vmem:[%s665 + $0x58] sm:$0xff]
    %v678 = vld [vmem:[%s665 + $0x60] sm:$0xff]
    %v679 = vld [vmem:[%s665 + $0x68] sm:$0xff]
    %v680 = vld [vmem:[%s665 + $0x70] sm:$0xff]
    %v681 = vld [vmem:[%s665 + $0x78] sm:$0xff]
    %682 = vmatprep.subr.mxu0 0.0
    %683 = vmatpush1.msra.mxu0 %v681
    %684 = vmatprep.subr.mxu0 0.0
    %685 = vmatpush1.msra.mxu0 %v680
    %686 = vmatprep.subr.mxu0 0.0
    %687 = vmatpush1.msra.mxu0 %v679
    %688 = vmatprep.subr.mxu0 0.0
    %689 = vmatpush1.msra.mxu0 %v678
    %690 = vmatprep.subr.mxu0 0.0
    %691 = vmatpush1.msra.mxu0 %v677
    %692 = vmatprep.subr.mxu0 0.0
    %693 = vmatpush1.msra.mxu0 %v676
    %694 = vmatprep.subr.mxu0 0.0
    %695 = vmatpush1.msra.mxu0 %v675
    %696 = vmatprep.subr.mxu0 0.0
    %697 = vmatpush1.msra.mxu0 %v674
    %698 = vmatprep.subr.mxu0 0.0
    %699 = vmatpush1.msra.mxu0 %v673
    %700 = vmatprep.subr.mxu0 0.0
    %701 = vmatpush1.msra.mxu0 %v672
    %702 = vmatprep.subr.mxu0 0.0
    %703 = vmatpush1.msra.mxu0 %v671
    %704 = vmatprep.subr.mxu0 0.0
    %705 = vmatpush1.msra.mxu0 %v670
    %706 = vmatprep.subr.mxu0 0.0
    %707 = vmatpush1.msra.mxu0 %v669
    %708 = vmatprep.subr.mxu0 0.0
    %709 = vmatpush1.msra.mxu0 %v668
    %710 = vmatprep.subr.mxu0 0.0
    %711 = vmatpush1.msra.mxu0 %v667
    %712 = vmatprep.subr.mxu0 0.0
    %713 = vmatpush1.msra.mxu0 %v666
    %714 = vmatprep.subr.mxu0 0.0
    %715 = vmatpush2.msra.mxu0 0.0
    %716 = vmatprep.subr.mxu0 0.0
    %717 = vmatpush2.msra.mxu0 0.0
    %718 = vmatprep.subr.mxu0 0.0
    %719 = vmatpush2.msra.mxu0 0.0
    %720 = vmatprep.subr.mxu0 0.0
    %721 = vmatpush2.msra.mxu0 0.0
    %722 = vmatprep.subr.mxu0 0.0
    %723 = vmatpush2.msra.mxu0 0.0
    %724 = vmatprep.subr.mxu0 0.0
    %725 = vmatpush2.msra.mxu0 0.0
    %726 = vmatprep.subr.mxu0 0.0
    %727 = vmatpush2.msra.mxu0 0.0
    %728 = vmatprep.subr.mxu0 0.0
    %729 = vmatpush2.msra.mxu0 0.0
    %730 = vmatprep.subr.mxu0 0.0
    %731 = vmatpush2.msra.mxu0 0.0
    %732 = vmatprep.subr.mxu0 0.0
    %733 = vmatpush2.msra.mxu0 0.0
    %734 = vmatprep.subr.mxu0 0.0
    %735 = vmatpush2.msra.mxu0 0.0
    %736 = vmatprep.subr.mxu0 0.0
    %737 = vmatpush2.msra.mxu0 0.0
    %738 = vmatprep.subr.mxu0 0.0
    %739 = vmatpush2.msra.mxu0 0.0
    %740 = vmatprep.subr.mxu0 0.0
    %741 = vmatpush2.msra.mxu0 0.0
    %742 = vmatprep.subr.mxu0 0.0
    %743 = vmatpush2.msra.mxu0 0.0
    %744 = vmatprep.subr.mxu0 0.0
    %745 = vmatpush2.msra.mxu0 0.0
    %746 = vmatprep.mubr.f32.mxu0 0.0
    %747 = vmatmul.mubr.f32.gmra.mxu0 %v661
    %v748 = vpop.f32.mrf.mxu0
    %v749 = vadd.f32 0.0, %v748
    %v750 = vpop.f32.mrf.mxu0
    %751 = vmatprep.mubr.f32.mxu0 0.0
    %752 = vmatmul.mubr.f32.gmra.mxu0 %v662
    %v753 = vpop.f32.mrf.mxu0
    %v754 = vadd.f32 0.0, %v753
    %v755 = vpop.f32.mrf.mxu0
    %756 = vmatprep.mubr.f32.mxu0 0.0
    %757 = vmatmul.mubr.f32.gmra.mxu0 %v663
    %v758 = vpop.f32.mrf.mxu0
    %v759 = vadd.f32 0.0, %v758
    %v760 = vpop.f32.mrf.mxu0
    %761 = vmatprep.mubr.f32.mxu0 0.0
    %762 = vmatmul.mubr.f32.gmra.mxu0 %v664
    %v763 = vpop.f32.mrf.mxu0
    %v764 = vadd.f32 0.0, %v763
    %v765 = vpop.f32.mrf.mxu0
    %766 = vdwg.mxu0
    %767 = vmatprep.subr.mxu0 0.0
    %768 = vmatpush1.msra.mxu0 %v660
    %769 = vmatprep.subr.mxu0 0.0
    %770 = vmatpush1.msra.mxu0 %v659
    %771 = vmatprep.subr.mxu0 0.0
    %772 = vmatpush1.msra.mxu0 %v658
    %773 = vmatprep.subr.mxu0 0.0
    %774 = vmatpush1.msra.mxu0 %v657
    %775 = vmatprep.subr.mxu0 0.0
    %776 = vmatpush1.msra.mxu0 %v656
    %777 = vmatprep.subr.mxu0 0.0
    %778 = vmatpush1.msra.mxu0 %v655
    %779 = vmatprep.subr.mxu0 0.0
    %780 = vmatpush1.msra.mxu0 %v654
    %781 = vmatprep.subr.mxu0 0.0
    %782 = vmatpush1.msra.mxu0 %v653
    %783 = vmatprep.subr.mxu0 0.0
    %784 = vmatpush1.msra.mxu0 %v652
    %785 = vmatprep.subr.mxu0 0.0
    %786 = vmatpush1.msra.mxu0 %v651
    %787 = vmatprep.subr.mxu0 0.0
    %788 = vmatpush1.msra.mxu0 %v650
    %789 = vmatprep.subr.mxu0 0.0
    %790 = vmatpush1.msra.mxu0 %v649
    %791 = vmatprep.subr.mxu0 0.0
    %792 = vmatpush1.msra.mxu0 %v648
    %793 = vmatprep.subr.mxu0 0.0
    %794 = vmatpush1.msra.mxu0 %v647
    %795 = vmatprep.subr.mxu0 0.0
    %796 = vmatpush1.msra.mxu0 %v646
    %797 = vmatprep.subr.mxu0 0.0
    %798 = vmatpush1.msra.mxu0 %v645
    %799 = vmatprep.subr.mxu0 0.0
    %800 = vmatpush2.msra.mxu0 0.0
    %801 = vmatprep.subr.mxu0 0.0
    %802 = vmatpush2.msra.mxu0 0.0
    %803 = vmatprep.subr.mxu0 0.0
    %804 = vmatpush2.msra.mxu0 0.0
    %805 = vmatprep.subr.mxu0 0.0
    %806 = vmatpush2.msra.mxu0 0.0
    %807 = vmatprep.subr.mxu0 0.0
    %808 = vmatpush2.msra.mxu0 0.0
    %809 = vmatprep.subr.mxu0 0.0
    %810 = vmatpush2.msra.mxu0 0.0
    %811 = vmatprep.subr.mxu0 0.0
    %812 = vmatpush2.msra.mxu0 0.0
    %813 = vmatprep.subr.mxu0 0.0
    %814 = vmatpush2.msra.mxu0 0.0
    %815 = vmatprep.subr.mxu0 0.0
    %816 = vmatpush2.msra.mxu0 0.0
    %817 = vmatprep.subr.mxu0 0.0
    %818 = vmatpush2.msra.mxu0 0.0
    %819 = vmatprep.subr.mxu0 0.0
    %820 = vmatpush2.msra.mxu0 0.0
    %821 = vmatprep.subr.mxu0 0.0
    %822 = vmatpush2.msra.mxu0 0.0
    %823 = vmatprep.subr.mxu0 0.0
    %824 = vmatpush2.msra.mxu0 0.0
    %825 = vmatprep.subr.mxu0 0.0
    %826 = vmatpush2.msra.mxu0 0.0
    %827 = vmatprep.subr.mxu0 0.0
    %828 = vmatpush2.msra.mxu0 0.0
    %829 = vmatprep.subr.mxu0 0.0
    %830 = vmatpush2.msra.mxu0 0.0
    %831 = vmatprep.mubr.f32.mxu0 0.0
    %832 = vmatmul.mubr.f32.gmra.mxu0 %v641
    %v833 = vpop.f32.mrf.mxu0
    %v834 = vadd.f32 %v749, %v833
    %v835 = vpop.f32.mrf.mxu0
    %836 = vmatprep.mubr.f32.mxu0 0.0
    %837 = vmatmul.mubr.f32.gmra.mxu0 %v642
    %v838 = vpop.f32.mrf.mxu0
    %v839 = vadd.f32 %v754, %v838
    %v840 = vpop.f32.mrf.mxu0
    %841 = vmatprep.mubr.f32.mxu0 0.0
    %842 = vmatmul.mubr.f32.gmra.mxu0 %v643
    %v843 = vpop.f32.mrf.mxu0
    %v844 = vadd.f32 %v759, %v843
    %v845 = vpop.f32.mrf.mxu0
    %846 = vmatprep.mubr.f32.mxu0 0.0
    %847 = vmatmul.mubr.f32.gmra.mxu0 %v644
    %v848 = vpop.f32.mrf.mxu0
    %v849 = vadd.f32 %v764, %v848
    %v850 = vpop.f32.mrf.mxu0
    %851 = vdwg.mxu0
    %v852 = vld [vmem:[#allocation2 + $0x2] sm:$0xff]
    %v853 = vld [vmem:[#allocation2 + $0xa] sm:$0xff]
    %v854 = vld [vmem:[#allocation2 + $0x1a] sm:$0xff]
    %v855 = vld [vmem:[#allocation2 + $0x22] sm:$0xff]
    %s856 = scalar_lea.vmem [#allocation6], 256
    %v857 = vld [vmem:[%s856] sm:$0xff]
    %v858 = vld [vmem:[%s856 + $0x8] sm:$0xff]
    %v859 = vld [vmem:[%s856 + $0x10] sm:$0xff]
    %v860 = vld [vmem:[%s856 + $0x18] sm:$0xff]
    %v861 = vld [vmem:[%s856 + $0x20] sm:$0xff]
    %v862 = vld [vmem:[%s856 + $0x28] sm:$0xff]
    %v863 = vld [vmem:[%s856 + $0x30] sm:$0xff]
    %v864 = vld [vmem:[%s856 + $0x38] sm:$0xff]
    %v865 = vld [vmem:[%s856 + $0x40] sm:$0xff]
    %v866 = vld [vmem:[%s856 + $0x48] sm:$0xff]
    %v867 = vld [vmem:[%s856 + $0x50] sm:$0xff]
    %v868 = vld [vmem:[%s856 + $0x58] sm:$0xff]
    %v869 = vld [vmem:[%s856 + $0x60] sm:$0xff]
    %v870 = vld [vmem:[%s856 + $0x68] sm:$0xff]
    %v871 = vld [vmem:[%s856 + $0x70] sm:$0xff]
    %v872 = vld [vmem:[%s856 + $0x78] sm:$0xff]
    %873 = vmatprep.subr.mxu0 0.0
    %874 = vmatpush1.msra.mxu0 %v872
    %875 = vmatprep.subr.mxu0 0.0
    %876 = vmatpush1.msra.mxu0 %v871
    %877 = vmatprep.subr.mxu0 0.0
    %878 = vmatpush1.msra.mxu0 %v870
    %879 = vmatprep.subr.mxu0 0.0
    %880 = vmatpush1.msra.mxu0 %v869
    %881 = vmatprep.subr.mxu0 0.0
    %882 = vmatpush1.msra.mxu0 %v868
    %883 = vmatprep.subr.mxu0 0.0
    %884 = vmatpush1.msra.mxu0 %v867
    %885 = vmatprep.subr.mxu0 0.0
    %886 = vmatpush1.msra.mxu0 %v866
    %887 = vmatprep.subr.mxu0 0.0
    %888 = vmatpush1.msra.mxu0 %v865
    %889 = vmatprep.subr.mxu0 0.0
    %890 = vmatpush1.msra.mxu0 %v864
    %891 = vmatprep.subr.mxu0 0.0
    %892 = vmatpush1.msra.mxu0 %v863
    %893 = vmatprep.subr.mxu0 0.0
    %894 = vmatpush1.msra.mxu0 %v862
    %895 = vmatprep.subr.mxu0 0.0
    %896 = vmatpush1.msra.mxu0 %v861
    %897 = vmatprep.subr.mxu0 0.0
    %898 = vmatpush1.msra.mxu0 %v860
    %899 = vmatprep.subr.mxu0 0.0
    %900 = vmatpush1.msra.mxu0 %v859
    %901 = vmatprep.subr.mxu0 0.0
    %902 = vmatpush1.msra.mxu0 %v858
    %903 = vmatprep.subr.mxu0 0.0
    %904 = vmatpush1.msra.mxu0 %v857
    %905 = vmatprep.subr.mxu0 0.0
    %906 = vmatpush2.msra.mxu0 0.0
    %907 = vmatprep.subr.mxu0 0.0
    %908 = vmatpush2.msra.mxu0 0.0
    %909 = vmatprep.subr.mxu0 0.0
    %910 = vmatpush2.msra.mxu0 0.0
    %911 = vmatprep.subr.mxu0 0.0
    %912 = vmatpush2.msra.mxu0 0.0
    %913 = vmatprep.subr.mxu0 0.0
    %914 = vmatpush2.msra.mxu0 0.0
    %915 = vmatprep.subr.mxu0 0.0
    %916 = vmatpush2.msra.mxu0 0.0
    %917 = vmatprep.subr.mxu0 0.0
    %918 = vmatpush2.msra.mxu0 0.0
    %919 = vmatprep.subr.mxu0 0.0
    %920 = vmatpush2.msra.mxu0 0.0
    %921 = vmatprep.subr.mxu0 0.0
    %922 = vmatpush2.msra.mxu0 0.0
    %923 = vmatprep.subr.mxu0 0.0
    %924 = vmatpush2.msra.mxu0 0.0
    %925 = vmatprep.subr.mxu0 0.0
    %926 = vmatpush2.msra.mxu0 0.0
    %927 = vmatprep.subr.mxu0 0.0
    %928 = vmatpush2.msra.mxu0 0.0
    %929 = vmatprep.subr.mxu0 0.0
    %930 = vmatpush2.msra.mxu0 0.0
    %931 = vmatprep.subr.mxu0 0.0
    %932 = vmatpush2.msra.mxu0 0.0
    %933 = vmatprep.subr.mxu0 0.0
    %934 = vmatpush2.msra.mxu0 0.0
    %935 = vmatprep.subr.mxu0 0.0
    %936 = vmatpush2.msra.mxu0 0.0
    %937 = vmatprep.mubr.f32.mxu0 0.0
    %938 = vmatmul.mubr.f32.gmra.mxu0 %v852
    %v939 = vpop.f32.mrf.mxu0
    %v940 = vadd.f32 0.0, %v939
    %v941 = vpop.f32.mrf.mxu0
    %942 = vmatprep.mubr.f32.mxu0 0.0
    %943 = vmatmul.mubr.f32.gmra.mxu0 %v853
    %v944 = vpop.f32.mrf.mxu0
    %v945 = vadd.f32 0.0, %v944
    %v946 = vpop.f32.mrf.mxu0
    %947 = vmatprep.mubr.f32.mxu0 0.0
    %948 = vmatmul.mubr.f32.gmra.mxu0 %v854
    %v949 = vpop.f32.mrf.mxu0
    %v950 = vadd.f32 0.0, %v949
    %v951 = vpop.f32.mrf.mxu0
    %952 = vmatprep.mubr.f32.mxu0 0.0
    %953 = vmatmul.mubr.f32.gmra.mxu0 %v855
    %v954 = vpop.f32.mrf.mxu0
    %v955 = vadd.f32 0.0, %v954
    %v956 = vpop.f32.mrf.mxu0
    %957 = vdwg.mxu0
    %v958 = vadd.f32 %v834, %v940
    %v959 = vadd.f32 %v839, %v945
    %v960 = vadd.f32 %v844, %v950
    %v961 = vadd.f32 %v849, %v955
    %962 = vmatprep.subr.mxu0 0.0
    %963 = vmatpush1.msra.mxu0 %v86
    %964 = vmatprep.subr.mxu0 0.0
    %965 = vmatpush1.msra.mxu0 %v85
    %966 = vmatprep.subr.mxu0 0.0
    %967 = vmatpush1.msra.mxu0 %v84
    %968 = vmatprep.subr.mxu0 0.0
    %969 = vmatpush1.msra.mxu0 %v83
    %970 = vmatprep.subr.mxu0 0.0
    %971 = vmatpush1.msra.mxu0 %v82
    %972 = vmatprep.subr.mxu0 0.0
    %973 = vmatpush1.msra.mxu0 %v81
    %974 = vmatprep.subr.mxu0 0.0
    %975 = vmatpush1.msra.mxu0 %v80
    %976 = vmatprep.subr.mxu0 0.0
    %977 = vmatpush1.msra.mxu0 %v79
    %978 = vmatprep.subr.mxu0 0.0
    %979 = vmatpush1.msra.mxu0 %v78
    %980 = vmatprep.subr.mxu0 0.0
    %981 = vmatpush1.msra.mxu0 %v77
    %982 = vmatprep.subr.mxu0 0.0
    %983 = vmatpush1.msra.mxu0 %v76
    %984 = vmatprep.subr.mxu0 0.0
    %985 = vmatpush1.msra.mxu0 %v75
    %986 = vmatprep.subr.mxu0 0.0
    %987 = vmatpush1.msra.mxu0 %v74
    %988 = vmatprep.subr.mxu0 0.0
    %989 = vmatpush1.msra.mxu0 %v73
    %990 = vmatprep.subr.mxu0 0.0
    %991 = vmatpush1.msra.mxu0 %v72
    %992 = vmatprep.subr.mxu0 0.0
    %993 = vmatpush1.msra.mxu0 %v71
    %994 = vmatprep.subr.mxu0 0.0
    %995 = vmatpush2.msra.mxu0 0.0
    %996 = vmatprep.subr.mxu0 0.0
    %997 = vmatpush2.msra.mxu0 0.0
    %998 = vmatprep.subr.mxu0 0.0
    %999 = vmatpush2.msra.mxu0 0.0
    %1000 = vmatprep.subr.mxu0 0.0
    %1001 = vmatpush2.msra.mxu0 0.0
    %1002 = vmatprep.subr.mxu0 0.0
    %1003 = vmatpush2.msra.mxu0 0.0
    %1004 = vmatprep.subr.mxu0 0.0
    %1005 = vmatpush2.msra.mxu0 0.0
    %1006 = vmatprep.subr.mxu0 0.0
    %1007 = vmatpush2.msra.mxu0 0.0
    %1008 = vmatprep.subr.mxu0 0.0
    %1009 = vmatpush2.msra.mxu0 0.0
    %1010 = vmatprep.subr.mxu0 0.0
    %1011 = vmatpush2.msra.mxu0 0.0
    %1012 = vmatprep.subr.mxu0 0.0
    %1013 = vmatpush2.msra.mxu0 0.0
    %1014 = vmatprep.subr.mxu0 0.0
    %1015 = vmatpush2.msra.mxu0 0.0
    %1016 = vmatprep.subr.mxu0 0.0
    %1017 = vmatpush2.msra.mxu0 0.0
    %1018 = vmatprep.subr.mxu0 0.0
    %1019 = vmatpush2.msra.mxu0 0.0
    %1020 = vmatprep.subr.mxu0 0.0
    %1021 = vmatpush2.msra.mxu0 0.0
    %1022 = vmatprep.subr.mxu0 0.0
    %1023 = vmatpush2.msra.mxu0 0.0
    %1024 = vmatprep.subr.mxu0 0.0
    %1025 = vmatpush2.msra.mxu0 0.0
    %1026 = vmatprep.mubr.f32.mxu0 0.0
    %1027 = vmatmul.mubr.f32.gmra.mxu0 %v958
    %v1028 = vpop.f32.mrf.mxu0
    %v1029 = vadd.f32 0.0, %v1028
    %v1030 = vpop.f32.mrf.mxu0
    %1031 = vmatprep.mubr.f32.mxu0 0.0
    %1032 = vmatmul.mubr.f32.gmra.mxu0 %v959
    %v1033 = vpop.f32.mrf.mxu0
    %v1034 = vadd.f32 0.0, %v1033
    %v1035 = vpop.f32.mrf.mxu0
    %1036 = vmatprep.mubr.f32.mxu0 0.0
    %1037 = vmatmul.mubr.f32.gmra.mxu0 %v960
    %v1038 = vpop.f32.mrf.mxu0
    %v1039 = vadd.f32 0.0, %v1038
    %v1040 = vpop.f32.mrf.mxu0
    %1041 = vmatprep.mubr.f32.mxu0 0.0
    %1042 = vmatmul.mubr.f32.gmra.mxu0 %v961
    %v1043 = vpop.f32.mrf.mxu0
    %v1044 = vadd.f32 0.0, %v1043
    %v1045 = vpop.f32.mrf.mxu0
    %1046 = vdwg.mxu0
    %v1047 = vadd.f32 %v1029, %v1034
    %v1048 = vadd.f32 %v1047, %v1039
    %v1049 = vadd.f32 %v1048, %v1044
    %v1050 = vrot.slane %v1049, 4
    %v1051 = vadd.f32 %v1049, %v1050
    %v1052 = vrot.slane %v1051, 2
    %v1053 = vadd.f32 %v1051, %v1052
    %v1054 = vrot.slane %v1053, 1
    %v1055 = vadd.f32 %v1053, %v1054
    %v1056 = vsub.f32 %v958, %v1055
    %v1057 = vsub.f32 %v959, %v1055
    %v1058 = vsub.f32 %v960, %v1055
    %v1059 = vsub.f32 %v961, %v1055
    %v1060 = vmul.f32 %v1056, %v1056
    %v1061 = vmul.f32 %v1057, %v1057
    %v1062 = vmul.f32 %v1058, %v1058
    %v1063 = vmul.f32 %v1059, %v1059
    %1064 = vmatprep.subr.mxu0 0.0
    %1065 = vmatpush1.msra.mxu0 %v86
    %1066 = vmatprep.subr.mxu0 0.0
    %1067 = vmatpush1.msra.mxu0 %v85
    %1068 = vmatprep.subr.mxu0 0.0
    %1069 = vmatpush1.msra.mxu0 %v84
    %1070 = vmatprep.subr.mxu0 0.0
    %1071 = vmatpush1.msra.mxu0 %v83
    %1072 = vmatprep.subr.mxu0 0.0
    %1073 = vmatpush1.msra.mxu0 %v82
    %1074 = vmatprep.subr.mxu0 0.0
    %1075 = vmatpush1.msra.mxu0 %v81
    %1076 = vmatprep.subr.mxu0 0.0
    %1077 = vmatpush1.msra.mxu0 %v80
    %1078 = vmatprep.subr.mxu0 0.0
    %1079 = vmatpush1.msra.mxu0 %v79
    %1080 = vmatprep.subr.mxu0 0.0
    %1081 = vmatpush1.msra.mxu0 %v78
    %1082 = vmatprep.subr.mxu0 0.0
    %1083 = vmatpush1.msra.mxu0 %v77
    %1084 = vmatprep.subr.mxu0 0.0
    %1085 = vmatpush1.msra.mxu0 %v76
    %1086 = vmatprep.subr.mxu0 0.0
    %1087 = vmatpush1.msra.mxu0 %v75
    %1088 = vmatprep.subr.mxu0 0.0
    %1089 = vmatpush1.msra.mxu0 %v74
    %1090 = vmatprep.subr.mxu0 0.0
    %1091 = vmatpush1.msra.mxu0 %v73
    %1092 = vmatprep.subr.mxu0 0.0
    %1093 = vmatpush1.msra.mxu0 %v72
    %1094 = vmatprep.subr.mxu0 0.0
    %1095 = vmatpush1.msra.mxu0 %v71
    %1096 = vmatprep.subr.mxu0 0.0
    %1097 = vmatpush2.msra.mxu0 0.0
    %1098 = vmatprep.subr.mxu0 0.0
    %1099 = vmatpush2.msra.mxu0 0.0
    %1100 = vmatprep.subr.mxu0 0.0
    %1101 = vmatpush2.msra.mxu0 0.0
    %1102 = vmatprep.subr.mxu0 0.0
    %1103 = vmatpush2.msra.mxu0 0.0
    %1104 = vmatprep.subr.mxu0 0.0
    %1105 = vmatpush2.msra.mxu0 0.0
    %1106 = vmatprep.subr.mxu0 0.0
    %1107 = vmatpush2.msra.mxu0 0.0
    %1108 = vmatprep.subr.mxu0 0.0
    %1109 = vmatpush2.msra.mxu0 0.0
    %1110 = vmatprep.subr.mxu0 0.0
    %1111 = vmatpush2.msra.mxu0 0.0
    %1112 = vmatprep.subr.mxu0 0.0
    %1113 = vmatpush2.msra.mxu0 0.0
    %1114 = vmatprep.subr.mxu0 0.0
    %1115 = vmatpush2.msra.mxu0 0.0
    %1116 = vmatprep.subr.mxu0 0.0
    %1117 = vmatpush2.msra.mxu0 0.0
    %1118 = vmatprep.subr.mxu0 0.0
    %1119 = vmatpush2.msra.mxu0 0.0
    %1120 = vmatprep.subr.mxu0 0.0
    %1121 = vmatpush2.msra.mxu0 0.0
    %1122 = vmatprep.subr.mxu0 0.0
    %1123 = vmatpush2.msra.mxu0 0.0
    %1124 = vmatprep.subr.mxu0 0.0
    %1125 = vmatpush2.msra.mxu0 0.0
    %1126 = vmatprep.subr.mxu0 0.0
    %1127 = vmatpush2.msra.mxu0 0.0
    %1128 = vmatprep.mubr.f32.mxu0 0.0
    %1129 = vmatmul.mubr.f32.gmra.mxu0 %v1060
    %v1130 = vpop.f32.mrf.mxu0
    %v1131 = vadd.f32 0.0, %v1130
    %v1132 = vpop.f32.mrf.mxu0
    %1133 = vmatprep.mubr.f32.mxu0 0.0
    %1134 = vmatmul.mubr.f32.gmra.mxu0 %v1061
    %v1135 = vpop.f32.mrf.mxu0
    %v1136 = vadd.f32 0.0, %v1135
    %v1137 = vpop.f32.mrf.mxu0
    %1138 = vmatprep.mubr.f32.mxu0 0.0
    %1139 = vmatmul.mubr.f32.gmra.mxu0 %v1062
    %v1140 = vpop.f32.mrf.mxu0
    %v1141 = vadd.f32 0.0, %v1140
    %v1142 = vpop.f32.mrf.mxu0
    %1143 = vmatprep.mubr.f32.mxu0 0.0
    %1144 = vmatmul.mubr.f32.gmra.mxu0 %v1063
    %v1145 = vpop.f32.mrf.mxu0
    %v1146 = vadd.f32 0.0, %v1145
    %v1147 = vpop.f32.mrf.mxu0
    %1148 = vdwg.mxu0
    %v1149 = vadd.f32 %v1131, %v1136
    %v1150 = vadd.f32 %v1149, %v1141
    %v1151 = vadd.f32 %v1150, %v1146
    %v1152 = vrot.slane %v1151, 4
    %v1153 = vadd.f32 %v1151, %v1152
    %v1154 = vrot.slane %v1153, 2
    %v1155 = vadd.f32 %v1153, %v1154
    %v1156 = vrot.slane %v1155, 1
    %v1157 = vadd.f32 %v1155, %v1156
    %v1158 = vld [vmem:[%s6] sm:$0x1]
    %v1159 = vadd.f32 %v1157, 1e-05
    %v1160 = vrsqrt.pop %v1159
    %v1161 = vmul.f32 %v1158, %v1160
    %v1163 = vlaneseq
    %v1164 = vshrl.u32 %v1163, 7
    %v1165 = vsub.s32 0, %v1164
    %v1166 = vrot.slane %v1161, %v1165
    %v1168 = vmul.f32 %v1056, %v1166
    %v1169 = vmul.f32 %v1057, %v1166
    %v1170 = vmul.f32 %v1058, %v1166
    %v1171 = vmul.f32 %v1059, %v1166
    %v1172 = vld [vmem:[%s7] sm:$0x1]
    %v1174 = vlaneseq
    %v1175 = vshrl.u32 %v1174, 7
    %v1176 = vsub.s32 0, %v1175
    %v1177 = vrot.slane %v1172, %v1176
    %v1179 = vadd.f32 %v1168, %v1177
    %v1180 = vadd.f32 %v1169, %v1177
    %v1181 = vadd.f32 %v1170, %v1177
    %v1182 = vadd.f32 %v1171, %v1177
    %v1183 = vld [vmem:[%s0 + $0x1] sm:$0xff]
    %v1184 = vld [vmem:[%s0 + $0x9] sm:$0xff]
    %v1185 = vld [vmem:[%s0 + $0x19] sm:$0xff]
    %v1186 = vld [vmem:[%s0 + $0x21] sm:$0xff]
    %v1187 = vadd.f32 %v1179, %v1183
    %v1188 = vadd.f32 %v1180, %v1184
    %v1189 = vadd.f32 %v1181, %v1185
    %v1190 = vadd.f32 %v1182, %v1186
    %v1191 = vmax.f32 %v1187, 0.0
    %v1192 = vmax.f32 %v1188, 0.0
    %v1193 = vmax.f32 %v1189, 0.0
    %v1194 = vmax.f32 %v1190, 0.0
    %1195 = vst [vmem:[#allocation9] sm:$0xff] %v1191
    %1196 = vst [vmem:[#allocation9 + $0x8] sm:$0xff] %v1192
    %1197 = vst [vmem:[#allocation9 + $0x10] sm:$0xff] %v1193
    %1198 = vst [vmem:[#allocation9 + $0x18] sm:$0xff] %v1194
    // Predicated region
    $region46: #{tpu_custom_call.1} parent=1 // pred_check
      _
    $region47: #{tpu_custom_call.1} parent=1 // pred_check_branch
      %1200 = sbr.rel (0) target = $region49
    $region48: #{tpu_custom_call.1} parent=1 // pred_region
      %s1202 = ssub.s32 512, 512
      %1203 = vsyncadd [#allocation5], %s1202
      %s1204 = sshll.u32 [#allocation9], 4
      %s1205 = int_to_ptr.vmem [resolvable:$true] %s1204
      %1210 = dma.vmem_to_hbm [thread:$0]  %s1205, 512, %s8, [#allocation5], 128, 128, 8
    $region49: #{tpu_custom_call.1} parent=1 // pred_fallthru
      _
    // Predicated region
    $region50: #{tpu_custom_call.1} parent=1 // pred_check
      _
    $region51: #{tpu_custom_call.1} parent=1 // pred_check_branch
      %1212 = sbr.rel (0) target = $region53
    $region52: #{tpu_custom_call.1} parent=1 // pred_region
      %1213 = dma.done [#allocation5], 512
    $region53: #{tpu_custom_call.1} parent=1 // pred_fallthru
      _
    %1214 = vsyncpa [#allocation4], 1
    %1215 = vsyncpa [#allocation7], 1
    %1216 = vsyncpa [#allocation5], 1

</llo_original>
